<compile_context>
chip_gen: v5e
topology: v5e:2x2
jax: 0.10.0
libtpu: 0.0.40
codegen_flags: <defaults>
</compile_context>

<pallas_src>
import jax
import jax.numpy as jnp
from jax import lax
from jax.experimental import pallas as pl
from jax.experimental.pallas import tpu as pltpu

_LANES = 128
_CHUNK_ROWS = 64           # (64, 128) f32 chunk = 8 vregs; fused compute+reduce
_MAX_BLOCK_ROWS = 2048     # 2048 * 128 * 4 B = 1 MiB f32 input tile
_SMALL_N = 65536           # below ~one tile: pure-jnp fast path


def _bce_elementwise(x, target: float, use_sigmoid: bool):
    """Per-element BCE(-with-logits) loss in f32, matching torch semantics."""
    x = x.astype(jnp.float32)
    if use_sigmoid:
        # Numerically stable BCEWithLogitsLoss:
        #   l = max(x, 0) - x * t + log1p(exp(-|x|))
        return jnp.maximum(x, 0.0) - x * target + jnp.log1p(jnp.exp(-jnp.abs(x)))
    # BCELoss on probabilities; PyTorch clamps the log terms at -100.
    log_p = jnp.maximum(jnp.log(x), -100.0)
    log_1mp = jnp.maximum(jnp.log1p(-x), -100.0)
    return -(target * log_p + (1.0 - target) * log_1mp)


def _make_gan_loss_kernel(block_rows: int, target: float, use_sigmoid: bool):
    """Partial-sum kernel over one unpadded (block_rows, 128) tile.

    y_ref:   (block_rows, 128) tile of logits / probabilities (no padding).
    out_ref: (8, 128) per-block partial sums (lane-dense, tile-aligned).
    """
    n_chunks = block_rows // _CHUNK_ROWS
    groups = _CHUNK_ROWS // 8

    def kernel(y_ref, out_ref):
        def body(j, acc):
            base = pl.multiple_of(j * _CHUNK_ROWS, _CHUNK_ROWS)
            x = y_ref[pl.ds(base, _CHUNK_ROWS), :]
            loss = _bce_elementwise(x, target, use_sigmoid)       # (64, 128) f32
            # Fold the 64 sublanes into one (8, 128) tile of sums (pure VALU).
            part = loss[0:8, :]
            for s in range(1, groups):
                part = part + loss[s * 8:(s + 1) * 8, :]
            return acc + part

        acc = lax.fori_loop(0, n_chunks, body,
                            jnp.zeros((8, _LANES), jnp.float32), unroll=True)
        out_ref[...] = acc

    return kernel


def gan_loss(y, as_real: bool = True, *, label_smoothing: bool = False,
             use_sigmoid: bool = True):
    """JAX/Pallas equivalent of GANLoss().forward(y, as_real)."""
    a = 0.9 if label_smoothing else 1.0
    target = float(a) if as_real else 0.0

    yf = jnp.reshape(y, (-1,))
    n = yf.shape[0]

    # Small-N fast path: kernel launch + partials reduce is pure fixed cost
    # for typical (batch, 1) discriminator heads.
    if n < _SMALL_N:
        return jnp.mean(_bce_elementwise(yf, target, use_sigmoid))

    # Pick ~1 MiB tiles but cap so the grid has >= 2 steps (v7x: 2 TCs).
    rows_total = n // _LANES
    block_rows = min(_MAX_BLOCK_ROWS,
                     max(_CHUNK_ROWS,
                         (rows_total // 2 // _CHUNK_ROWS) * _CHUNK_ROWS))

    # Copy-free split: the contiguous main prefix (an exact multiple of one
    # tile — no padding, no mask) goes through the kernel; the small tail is
    # summed in plain jnp in the wrapper.
    elems_per_block = block_rows * _LANES
    n_main = (n // elems_per_block) * elems_per_block
    rows_main = n_main // _LANES
    grid = (rows_main // block_rows,)

    y_main = yf[:n_main].reshape(rows_main, _LANES)

    itemsize = jnp.dtype(y.dtype).itemsize
    cost = pl.CostEstimate(
        flops=10 * n_main,
        transcendentals=2 * n_main,
        bytes_accessed=n_main * itemsize + grid[0] * 8 * _LANES * 4,
    )

    partials = pl.pallas_call(
        _make_gan_loss_kernel(block_rows, target, use_sigmoid),
        out_shape=jax.ShapeDtypeStruct((grid[0] * 8, _LANES), jnp.float32),
        grid=grid,
        in_specs=[pl.BlockSpec((block_rows, _LANES), lambda i: (i, 0))],
        out_specs=pl.BlockSpec((8, _LANES), lambda i: (i, 0)),
        compiler_params=pltpu.CompilerParams(
            dimension_semantics=("parallel",),     # no cross-grid carry
        ),
        cost_estimate=cost,
    )(y_main)

    total = jnp.sum(partials)
    if n_main < n:
        total = total + jnp.sum(
            _bce_elementwise(yf[n_main:], target, use_sigmoid))
    return total / n


def gan_g_loss(y, *, use_sigmoid: bool = True):
    """Equivalent of GANLoss.G_loss(y): BCE against all-ones (no smoothing)."""
    return gan_loss(y, as_real=True, label_smoothing=False,
                    use_sigmoid=use_sigmoid)


def _ref_gan_loss(y, as_real=True, label_smoothing=False, use_sigmoid=True):
    """Pure-JAX reference mirroring torch's BCEWithLogitsLoss / BCELoss."""
    a = 0.9 if label_smoothing else 1.0
    t = a if as_real else 0.0
    return jnp.mean(_bce_elementwise(jnp.reshape(y, (-1,)), t, use_sigmoid))


if __name__ == "__main__":
    key = jax.random.PRNGKey(0)
    k1, k2 = jax.random.split(key)

    # Tiny discriminator head (batch, 1): exercises the small-N fast path.
    y_small = jax.random.normal(k1, (8, 1), dtype=jnp.float32)
    loss_small_real = jax.block_until_ready(gan_loss(y_small, as_real=True))
    loss_small_fake = jax.block_until_ready(gan_loss(y_small, as_real=False))
    assert loss_small_real.shape == () and jnp.isfinite(loss_small_real)
    assert jnp.allclose(loss_small_real, _ref_gan_loss(y_small, True),
                        rtol=1e-5, atol=1e-6)
    assert jnp.allclose(loss_small_fake, _ref_gan_loss(y_small, False),
                        rtol=1e-5, atol=1e-6)

    # PatchGAN-style logit map (2, 1, 256, 256): exercises the Pallas kernel
    # (131072 elements -> (512, 128) tiles, 2 grid steps).
    y_patch = jax.random.normal(k2, (2, 1, 256, 256), dtype=jnp.float32)

    loss_real = jax.block_until_ready(gan_loss(y_patch, as_real=True))
    loss_fake = jax.block_until_ready(gan_loss(y_patch, as_real=False))
    loss_smooth = jax.block_until_ready(
        gan_loss(y_patch, as_real=True, label_smoothing=True))
    loss_g = jax.block_until_ready(gan_g_loss(y_patch))

    assert loss_real.shape == () and jnp.isfinite(loss_real)
    assert jnp.allclose(loss_real, _ref_gan_loss(y_patch, True),
                        rtol=1e-4, atol=1e-5)
    assert jnp.allclose(loss_fake, _ref_gan_loss(y_patch, False),
                        rtol=1e-4, atol=1e-5)
    assert jnp.allclose(loss_smooth,
                        _ref_gan_loss(y_patch, True, label_smoothing=True),
                        rtol=1e-4, atol=1e-5)
    assert jnp.allclose(loss_g, _ref_gan_loss(y_patch, True),
                        rtol=1e-4, atol=1e-5)

    # BCELoss path (use_sigmoid=False) on probabilities.
    y_prob = jax.nn.sigmoid(y_patch)
    loss_bce = jax.block_until_ready(
        gan_loss(y_prob, as_real=True, use_sigmoid=False))
    assert jnp.allclose(loss_bce, _ref_gan_loss(y_prob, True, use_sigmoid=False),
                        rtol=1e-4, atol=1e-5)

    print("KERNEL_OK")
</pallas_src>

<mosaic_0001>
module attributes {stable_mosaic.version = 11 : i64} {
  func.func @kernel(%arg0: i32, %arg1: memref<512x128xf32, #tpu.memory_space<vmem>>, %arg2: memref<8x128xf32, #tpu.memory_space<vmem>>) attributes {dimension_semantics = [#tpu.dimension_semantics<parallel>], iteration_bounds = array<i64: 2>, scalar_prefetch = 0 : i64, scratch_operands = 0 : i64, tpu.core_type = #tpu.core_type<tc>, window_params = [{transform_indices = @transform_0, window_bounds = array<i64: 512, 128>}, {transform_indices = @transform_1, window_bounds = array<i64: 8, 128>}]} {
    %cst = arith.constant 0.000000e+00 : f32
    %0 = vector.broadcast %cst : f32 to vector<8x128xf32>
    %c0_i32 = arith.constant 0 : i32
    %c64_i32 = arith.constant 64 : i32
    %1 = arith.muli %c0_i32, %c64_i32 : i32
    %2 = tpu.assume_multiple %1, 64 : i32
    %3 = arith.index_cast %2 : i32 to index
    %c0 = arith.constant 0 : index
    %4 = vector.load %arg1[%3, %c0] : memref<512x128xf32, #tpu.memory_space<vmem>>, vector<64x128xf32>
    %cst_0 = arith.constant 0.000000e+00 : f32
    %5 = vector.broadcast %cst_0 : f32 to vector<64x128xf32>
    %6 = arith.maximumf %4, %5 : vector<64x128xf32>
    %cst_1 = arith.constant 1.000000e+00 : f32
    %7 = vector.broadcast %cst_1 : f32 to vector<64x128xf32>
    %8 = arith.mulf %4, %7 : vector<64x128xf32>
    %9 = arith.subf %6, %8 : vector<64x128xf32>
    %10 = math.absf %4 : vector<64x128xf32>
    %cst_2 = arith.constant 0.000000e+00 : f32
    %11 = vector.broadcast %cst_2 : f32 to vector<64x128xf32>
    %12 = arith.subf %11, %10 : vector<64x128xf32>
    %13 = math.exp %12 : vector<64x128xf32>
    %14 = math.log1p %13 : vector<64x128xf32>
    %15 = arith.addf %9, %14 : vector<64x128xf32>
    %16 = vector.extract_strided_slice %15 {offsets = [0, 0], sizes = [8, 128], strides = [1, 1]} : vector<64x128xf32> to vector<8x128xf32>
    %17 = vector.extract_strided_slice %15 {offsets = [8, 0], sizes = [8, 128], strides = [1, 1]} : vector<64x128xf32> to vector<8x128xf32>
    %18 = arith.addf %16, %17 : vector<8x128xf32>
    %19 = vector.extract_strided_slice %15 {offsets = [16, 0], sizes = [8, 128], strides = [1, 1]} : vector<64x128xf32> to vector<8x128xf32>
    %20 = arith.addf %18, %19 : vector<8x128xf32>
    %21 = vector.extract_strided_slice %15 {offsets = [24, 0], sizes = [8, 128], strides = [1, 1]} : vector<64x128xf32> to vector<8x128xf32>
    %22 = arith.addf %20, %21 : vector<8x128xf32>
    %23 = vector.extract_strided_slice %15 {offsets = [32, 0], sizes = [8, 128], strides = [1, 1]} : vector<64x128xf32> to vector<8x128xf32>
    %24 = arith.addf %22, %23 : vector<8x128xf32>
    %25 = vector.extract_strided_slice %15 {offsets = [40, 0], sizes = [8, 128], strides = [1, 1]} : vector<64x128xf32> to vector<8x128xf32>
    %26 = arith.addf %24, %25 : vector<8x128xf32>
    %27 = vector.extract_strided_slice %15 {offsets = [48, 0], sizes = [8, 128], strides = [1, 1]} : vector<64x128xf32> to vector<8x128xf32>
    %28 = arith.addf %26, %27 : vector<8x128xf32>
    %29 = vector.extract_strided_slice %15 {offsets = [56, 0], sizes = [8, 128], strides = [1, 1]} : vector<64x128xf32> to vector<8x128xf32>
    %30 = arith.addf %28, %29 : vector<8x128xf32>
    %31 = arith.addf %0, %30 : vector<8x128xf32>
    %c1_i32 = arith.constant 1 : i32
    %c64_i32_3 = arith.constant 64 : i32
    %32 = arith.muli %c1_i32, %c64_i32_3 : i32
    %33 = tpu.assume_multiple %32, 64 : i32
    %34 = arith.index_cast %33 : i32 to index
    %c0_4 = arith.constant 0 : index
    %35 = vector.load %arg1[%34, %c0_4] : memref<512x128xf32, #tpu.memory_space<vmem>>, vector<64x128xf32>
    %cst_5 = arith.constant 0.000000e+00 : f32
    %36 = vector.broadcast %cst_5 : f32 to vector<64x128xf32>
    %37 = arith.maximumf %35, %36 : vector<64x128xf32>
    %cst_6 = arith.constant 1.000000e+00 : f32
    %38 = vector.broadcast %cst_6 : f32 to vector<64x128xf32>
    %39 = arith.mulf %35, %38 : vector<64x128xf32>
    %40 = arith.subf %37, %39 : vector<64x128xf32>
    %41 = math.absf %35 : vector<64x128xf32>
    %cst_7 = arith.constant 0.000000e+00 : f32
    %42 = vector.broadcast %cst_7 : f32 to vector<64x128xf32>
    %43 = arith.subf %42, %41 : vector<64x128xf32>
    %44 = math.exp %43 : vector<64x128xf32>
    %45 = math.log1p %44 : vector<64x128xf32>
    %46 = arith.addf %40, %45 : vector<64x128xf32>
    %47 = vector.extract_strided_slice %46 {offsets = [0, 0], sizes = [8, 128], strides = [1, 1]} : vector<64x128xf32> to vector<8x128xf32>
    %48 = vector.extract_strided_slice %46 {offsets = [8, 0], sizes = [8, 128], strides = [1, 1]} : vector<64x128xf32> to vector<8x128xf32>
    %49 = arith.addf %47, %48 : vector<8x128xf32>
    %50 = vector.extract_strided_slice %46 {offsets = [16, 0], sizes = [8, 128], strides = [1, 1]} : vector<64x128xf32> to vector<8x128xf32>
    %51 = arith.addf %49, %50 : vector<8x128xf32>
    %52 = vector.extract_strided_slice %46 {offsets = [24, 0], sizes = [8, 128], strides = [1, 1]} : vector<64x128xf32> to vector<8x128xf32>
    %53 = arith.addf %51, %52 : vector<8x128xf32>
    %54 = vector.extract_strided_slice %46 {offsets = [32, 0], sizes = [8, 128], strides = [1, 1]} : vector<64x128xf32> to vector<8x128xf32>
    %55 = arith.addf %53, %54 : vector<8x128xf32>
    %56 = vector.extract_strided_slice %46 {offsets = [40, 0], sizes = [8, 128], strides = [1, 1]} : vector<64x128xf32> to vector<8x128xf32>
    %57 = arith.addf %55, %56 : vector<8x128xf32>
    %58 = vector.extract_strided_slice %46 {offsets = [48, 0], sizes = [8, 128], strides = [1, 1]} : vector<64x128xf32> to vector<8x128xf32>
    %59 = arith.addf %57, %58 : vector<8x128xf32>
    %60 = vector.extract_strided_slice %46 {offsets = [56, 0], sizes = [8, 128], strides = [1, 1]} : vector<64x128xf32> to vector<8x128xf32>
    %61 = arith.addf %59, %60 : vector<8x128xf32>
    %62 = arith.addf %31, %61 : vector<8x128xf32>
    %c2_i32 = arith.constant 2 : i32
    %c64_i32_8 = arith.constant 64 : i32
    %63 = arith.muli %c2_i32, %c64_i32_8 : i32
    %64 = tpu.assume_multiple %63, 64 : i32
    %65 = arith.index_cast %64 : i32 to index
    %c0_9 = arith.constant 0 : index
    %66 = vector.load %arg1[%65, %c0_9] : memref<512x128xf32, #tpu.memory_space<vmem>>, vector<64x128xf32>
    %cst_10 = arith.constant 0.000000e+00 : f32
    %67 = vector.broadcast %cst_10 : f32 to vector<64x128xf32>
    %68 = arith.maximumf %66, %67 : vector<64x128xf32>
    %cst_11 = arith.constant 1.000000e+00 : f32
    %69 = vector.broadcast %cst_11 : f32 to vector<64x128xf32>
    %70 = arith.mulf %66, %69 : vector<64x128xf32>
    %71 = arith.subf %68, %70 : vector<64x128xf32>
    %72 = math.absf %66 : vector<64x128xf32>
    %cst_12 = arith.constant 0.000000e+00 : f32
    %73 = vector.broadcast %cst_12 : f32 to vector<64x128xf32>
    %74 = arith.subf %73, %72 : vector<64x128xf32>
    %75 = math.exp %74 : vector<64x128xf32>
    %76 = math.log1p %75 : vector<64x128xf32>
    %77 = arith.addf %71, %76 : vector<64x128xf32>
    %78 = vector.extract_strided_slice %77 {offsets = [0, 0], sizes = [8, 128], strides = [1, 1]} : vector<64x128xf32> to vector<8x128xf32>
    %79 = vector.extract_strided_slice %77 {offsets = [8, 0], sizes = [8, 128], strides = [1, 1]} : vector<64x128xf32> to vector<8x128xf32>
    %80 = arith.addf %78, %79 : vector<8x128xf32>
    %81 = vector.extract_strided_slice %77 {offsets = [16, 0], sizes = [8, 128], strides = [1, 1]} : vector<64x128xf32> to vector<8x128xf32>
    %82 = arith.addf %80, %81 : vector<8x128xf32>
    %83 = vector.extract_strided_slice %77 {offsets = [24, 0], sizes = [8, 128], strides = [1, 1]} : vector<64x128xf32> to vector<8x128xf32>
    %84 = arith.addf %82, %83 : vector<8x128xf32>
    %85 = vector.extract_strided_slice %77 {offsets = [32, 0], sizes = [8, 128], strides = [1, 1]} : vector<64x128xf32> to vector<8x128xf32>
    %86 = arith.addf %84, %85 : vector<8x128xf32>
    %87 = vector.extract_strided_slice %77 {offsets = [40, 0], sizes = [8, 128], strides = [1, 1]} : vector<64x128xf32> to vector<8x128xf32>
    %88 = arith.addf %86, %87 : vector<8x128xf32>
    %89 = vector.extract_strided_slice %77 {offsets = [48, 0], sizes = [8, 128], strides = [1, 1]} : vector<64x128xf32> to vector<8x128xf32>
    %90 = arith.addf %88, %89 : vector<8x128xf32>
    %91 = vector.extract_strided_slice %77 {offsets = [56, 0], sizes = [8, 128], strides = [1, 1]} : vector<64x128xf32> to vector<8x128xf32>
    %92 = arith.addf %90, %91 : vector<8x128xf32>
    %93 = arith.addf %62, %92 : vector<8x128xf32>
    %c3_i32 = arith.constant 3 : i32
    %c64_i32_13 = arith.constant 64 : i32
    %94 = arith.muli %c3_i32, %c64_i32_13 : i32
    %95 = tpu.assume_multiple %94, 64 : i32
    %96 = arith.index_cast %95 : i32 to index
    %c0_14 = arith.constant 0 : index
    %97 = vector.load %arg1[%96, %c0_14] : memref<512x128xf32, #tpu.memory_space<vmem>>, vector<64x128xf32>
    %cst_15 = arith.constant 0.000000e+00 : f32
    %98 = vector.broadcast %cst_15 : f32 to vector<64x128xf32>
    %99 = arith.maximumf %97, %98 : vector<64x128xf32>
    %cst_16 = arith.constant 1.000000e+00 : f32
    %100 = vector.broadcast %cst_16 : f32 to vector<64x128xf32>
    %101 = arith.mulf %97, %100 : vector<64x128xf32>
    %102 = arith.subf %99, %101 : vector<64x128xf32>
    %103 = math.absf %97 : vector<64x128xf32>
    %cst_17 = arith.constant 0.000000e+00 : f32
    %104 = vector.broadcast %cst_17 : f32 to vector<64x128xf32>
    %105 = arith.subf %104, %103 : vector<64x128xf32>
    %106 = math.exp %105 : vector<64x128xf32>
    %107 = math.log1p %106 : vector<64x128xf32>
    %108 = arith.addf %102, %107 : vector<64x128xf32>
    %109 = vector.extract_strided_slice %108 {offsets = [0, 0], sizes = [8, 128], strides = [1, 1]} : vector<64x128xf32> to vector<8x128xf32>
    %110 = vector.extract_strided_slice %108 {offsets = [8, 0], sizes = [8, 128], strides = [1, 1]} : vector<64x128xf32> to vector<8x128xf32>
    %111 = arith.addf %109, %110 : vector<8x128xf32>
    %112 = vector.extract_strided_slice %108 {offsets = [16, 0], sizes = [8, 128], strides = [1, 1]} : vector<64x128xf32> to vector<8x128xf32>
    %113 = arith.addf %111, %112 : vector<8x128xf32>
    %114 = vector.extract_strided_slice %108 {offsets = [24, 0], sizes = [8, 128], strides = [1, 1]} : vector<64x128xf32> to vector<8x128xf32>
    %115 = arith.addf %113, %114 : vector<8x128xf32>
    %116 = vector.extract_strided_slice %108 {offsets = [32, 0], sizes = [8, 128], strides = [1, 1]} : vector<64x128xf32> to vector<8x128xf32>
    %117 = arith.addf %115, %116 : vector<8x128xf32>
    %118 = vector.extract_strided_slice %108 {offsets = [40, 0], sizes = [8, 128], strides = [1, 1]} : vector<64x128xf32> to vector<8x128xf32>
    %119 = arith.addf %117, %118 : vector<8x128xf32>
    %120 = vector.extract_strided_slice %108 {offsets = [48, 0], sizes = [8, 128], strides = [1, 1]} : vector<64x128xf32> to vector<8x128xf32>
    %121 = arith.addf %119, %120 : vector<8x128xf32>
    %122 = vector.extract_strided_slice %108 {offsets = [56, 0], sizes = [8, 128], strides = [1, 1]} : vector<64x128xf32> to vector<8x128xf32>
    %123 = arith.addf %121, %122 : vector<8x128xf32>
    %124 = arith.addf %93, %123 : vector<8x128xf32>
    %c4_i32 = arith.constant 4 : i32
    %c64_i32_18 = arith.constant 64 : i32
    %125 = arith.muli %c4_i32, %c64_i32_18 : i32
    %126 = tpu.assume_multiple %125, 64 : i32
    %127 = arith.index_cast %126 : i32 to index
    %c0_19 = arith.constant 0 : index
    %128 = vector.load %arg1[%127, %c0_19] : memref<512x128xf32, #tpu.memory_space<vmem>>, vector<64x128xf32>
    %cst_20 = arith.constant 0.000000e+00 : f32
    %129 = vector.broadcast %cst_20 : f32 to vector<64x128xf32>
    %130 = arith.maximumf %128, %129 : vector<64x128xf32>
    %cst_21 = arith.constant 1.000000e+00 : f32
    %131 = vector.broadcast %cst_21 : f32 to vector<64x128xf32>
    %132 = arith.mulf %128, %131 : vector<64x128xf32>
    %133 = arith.subf %130, %132 : vector<64x128xf32>
    %134 = math.absf %128 : vector<64x128xf32>
    %cst_22 = arith.constant 0.000000e+00 : f32
    %135 = vector.broadcast %cst_22 : f32 to vector<64x128xf32>
    %136 = arith.subf %135, %134 : vector<64x128xf32>
    %137 = math.exp %136 : vector<64x128xf32>
    %138 = math.log1p %137 : vector<64x128xf32>
    %139 = arith.addf %133, %138 : vector<64x128xf32>
    %140 = vector.extract_strided_slice %139 {offsets = [0, 0], sizes = [8, 128], strides = [1, 1]} : vector<64x128xf32> to vector<8x128xf32>
    %141 = vector.extract_strided_slice %139 {offsets = [8, 0], sizes = [8, 128], strides = [1, 1]} : vector<64x128xf32> to vector<8x128xf32>
    %142 = arith.addf %140, %141 : vector<8x128xf32>
    %143 = vector.extract_strided_slice %139 {offsets = [16, 0], sizes = [8, 128], strides = [1, 1]} : vector<64x128xf32> to vector<8x128xf32>
    %144 = arith.addf %142, %143 : vector<8x128xf32>
    %145 = vector.extract_strided_slice %139 {offsets = [24, 0], sizes = [8, 128], strides = [1, 1]} : vector<64x128xf32> to vector<8x128xf32>
    %146 = arith.addf %144, %145 : vector<8x128xf32>
    %147 = vector.extract_strided_slice %139 {offsets = [32, 0], sizes = [8, 128], strides = [1, 1]} : vector<64x128xf32> to vector<8x128xf32>
    %148 = arith.addf %146, %147 : vector<8x128xf32>
    %149 = vector.extract_strided_slice %139 {offsets = [40, 0], sizes = [8, 128], strides = [1, 1]} : vector<64x128xf32> to vector<8x128xf32>
    %150 = arith.addf %148, %149 : vector<8x128xf32>
    %151 = vector.extract_strided_slice %139 {offsets = [48, 0], sizes = [8, 128], strides = [1, 1]} : vector<64x128xf32> to vector<8x128xf32>
    %152 = arith.addf %150, %151 : vector<8x128xf32>
    %153 = vector.extract_strided_slice %139 {offsets = [56, 0], sizes = [8, 128], strides = [1, 1]} : vector<64x128xf32> to vector<8x128xf32>
    %154 = arith.addf %152, %153 : vector<8x128xf32>
    %155 = arith.addf %124, %154 : vector<8x128xf32>
    %c5_i32 = arith.constant 5 : i32
    %c64_i32_23 = arith.constant 64 : i32
    %156 = arith.muli %c5_i32, %c64_i32_23 : i32
    %157 = tpu.assume_multiple %156, 64 : i32
    %158 = arith.index_cast %157 : i32 to index
    %c0_24 = arith.constant 0 : index
    %159 = vector.load %arg1[%158, %c0_24] : memref<512x128xf32, #tpu.memory_space<vmem>>, vector<64x128xf32>
    %cst_25 = arith.constant 0.000000e+00 : f32
    %160 = vector.broadcast %cst_25 : f32 to vector<64x128xf32>
    %161 = arith.maximumf %159, %160 : vector<64x128xf32>
    %cst_26 = arith.constant 1.000000e+00 : f32
    %162 = vector.broadcast %cst_26 : f32 to vector<64x128xf32>
    %163 = arith.mulf %159, %162 : vector<64x128xf32>
    %164 = arith.subf %161, %163 : vector<64x128xf32>
    %165 = math.absf %159 : vector<64x128xf32>
    %cst_27 = arith.constant 0.000000e+00 : f32
    %166 = vector.broadcast %cst_27 : f32 to vector<64x128xf32>
    %167 = arith.subf %166, %165 : vector<64x128xf32>
    %168 = math.exp %167 : vector<64x128xf32>
    %169 = math.log1p %168 : vector<64x128xf32>
    %170 = arith.addf %164, %169 : vector<64x128xf32>
    %171 = vector.extract_strided_slice %170 {offsets = [0, 0], sizes = [8, 128], strides = [1, 1]} : vector<64x128xf32> to vector<8x128xf32>
    %172 = vector.extract_strided_slice %170 {offsets = [8, 0], sizes = [8, 128], strides = [1, 1]} : vector<64x128xf32> to vector<8x128xf32>
    %173 = arith.addf %171, %172 : vector<8x128xf32>
    %174 = vector.extract_strided_slice %170 {offsets = [16, 0], sizes = [8, 128], strides = [1, 1]} : vector<64x128xf32> to vector<8x128xf32>
    %175 = arith.addf %173, %174 : vector<8x128xf32>
    %176 = vector.extract_strided_slice %170 {offsets = [24, 0], sizes = [8, 128], strides = [1, 1]} : vector<64x128xf32> to vector<8x128xf32>
    %177 = arith.addf %175, %176 : vector<8x128xf32>
    %178 = vector.extract_strided_slice %170 {offsets = [32, 0], sizes = [8, 128], strides = [1, 1]} : vector<64x128xf32> to vector<8x128xf32>
    %179 = arith.addf %177, %178 : vector<8x128xf32>
    %180 = vector.extract_strided_slice %170 {offsets = [40, 0], sizes = [8, 128], strides = [1, 1]} : vector<64x128xf32> to vector<8x128xf32>
    %181 = arith.addf %179, %180 : vector<8x128xf32>
    %182 = vector.extract_strided_slice %170 {offsets = [48, 0], sizes = [8, 128], strides = [1, 1]} : vector<64x128xf32> to vector<8x128xf32>
    %183 = arith.addf %181, %182 : vector<8x128xf32>
    %184 = vector.extract_strided_slice %170 {offsets = [56, 0], sizes = [8, 128], strides = [1, 1]} : vector<64x128xf32> to vector<8x128xf32>
    %185 = arith.addf %183, %184 : vector<8x128xf32>
    %186 = arith.addf %155, %185 : vector<8x128xf32>
    %c6_i32 = arith.constant 6 : i32
    %c64_i32_28 = arith.constant 64 : i32
    %187 = arith.muli %c6_i32, %c64_i32_28 : i32
    %188 = tpu.assume_multiple %187, 64 : i32
    %189 = arith.index_cast %188 : i32 to index
    %c0_29 = arith.constant 0 : index
    %190 = vector.load %arg1[%189, %c0_29] : memref<512x128xf32, #tpu.memory_space<vmem>>, vector<64x128xf32>
    %cst_30 = arith.constant 0.000000e+00 : f32
    %191 = vector.broadcast %cst_30 : f32 to vector<64x128xf32>
    %192 = arith.maximumf %190, %191 : vector<64x128xf32>
    %cst_31 = arith.constant 1.000000e+00 : f32
    %193 = vector.broadcast %cst_31 : f32 to vector<64x128xf32>
    %194 = arith.mulf %190, %193 : vector<64x128xf32>
    %195 = arith.subf %192, %194 : vector<64x128xf32>
    %196 = math.absf %190 : vector<64x128xf32>
    %cst_32 = arith.constant 0.000000e+00 : f32
    %197 = vector.broadcast %cst_32 : f32 to vector<64x128xf32>
    %198 = arith.subf %197, %196 : vector<64x128xf32>
    %199 = math.exp %198 : vector<64x128xf32>
    %200 = math.log1p %199 : vector<64x128xf32>
    %201 = arith.addf %195, %200 : vector<64x128xf32>
    %202 = vector.extract_strided_slice %201 {offsets = [0, 0], sizes = [8, 128], strides = [1, 1]} : vector<64x128xf32> to vector<8x128xf32>
    %203 = vector.extract_strided_slice %201 {offsets = [8, 0], sizes = [8, 128], strides = [1, 1]} : vector<64x128xf32> to vector<8x128xf32>
    %204 = arith.addf %202, %203 : vector<8x128xf32>
    %205 = vector.extract_strided_slice %201 {offsets = [16, 0], sizes = [8, 128], strides = [1, 1]} : vector<64x128xf32> to vector<8x128xf32>
    %206 = arith.addf %204, %205 : vector<8x128xf32>
    %207 = vector.extract_strided_slice %201 {offsets = [24, 0], sizes = [8, 128], strides = [1, 1]} : vector<64x128xf32> to vector<8x128xf32>
    %208 = arith.addf %206, %207 : vector<8x128xf32>
    %209 = vector.extract_strided_slice %201 {offsets = [32, 0], sizes = [8, 128], strides = [1, 1]} : vector<64x128xf32> to vector<8x128xf32>
    %210 = arith.addf %208, %209 : vector<8x128xf32>
    %211 = vector.extract_strided_slice %201 {offsets = [40, 0], sizes = [8, 128], strides = [1, 1]} : vector<64x128xf32> to vector<8x128xf32>
    %212 = arith.addf %210, %211 : vector<8x128xf32>
    %213 = vector.extract_strided_slice %201 {offsets = [48, 0], sizes = [8, 128], strides = [1, 1]} : vector<64x128xf32> to vector<8x128xf32>
    %214 = arith.addf %212, %213 : vector<8x128xf32>
    %215 = vector.extract_strided_slice %201 {offsets = [56, 0], sizes = [8, 128], strides = [1, 1]} : vector<64x128xf32> to vector<8x128xf32>
    %216 = arith.addf %214, %215 : vector<8x128xf32>
    %217 = arith.addf %186, %216 : vector<8x128xf32>
    %c7_i32 = arith.constant 7 : i32
    %c64_i32_33 = arith.constant 64 : i32
    %218 = arith.muli %c7_i32, %c64_i32_33 : i32
    %219 = tpu.assume_multiple %218, 64 : i32
    %220 = arith.index_cast %219 : i32 to index
    %c0_34 = arith.constant 0 : index
    %221 = vector.load %arg1[%220, %c0_34] : memref<512x128xf32, #tpu.memory_space<vmem>>, vector<64x128xf32>
    %cst_35 = arith.constant 0.000000e+00 : f32
    %222 = vector.broadcast %cst_35 : f32 to vector<64x128xf32>
    %223 = arith.maximumf %221, %222 : vector<64x128xf32>
    %cst_36 = arith.constant 1.000000e+00 : f32
    %224 = vector.broadcast %cst_36 : f32 to vector<64x128xf32>
    %225 = arith.mulf %221, %224 : vector<64x128xf32>
    %226 = arith.subf %223, %225 : vector<64x128xf32>
    %227 = math.absf %221 : vector<64x128xf32>
    %cst_37 = arith.constant 0.000000e+00 : f32
    %228 = vector.broadcast %cst_37 : f32 to vector<64x128xf32>
    %229 = arith.subf %228, %227 : vector<64x128xf32>
    %230 = math.exp %229 : vector<64x128xf32>
    %231 = math.log1p %230 : vector<64x128xf32>
    %232 = arith.addf %226, %231 : vector<64x128xf32>
    %233 = vector.extract_strided_slice %232 {offsets = [0, 0], sizes = [8, 128], strides = [1, 1]} : vector<64x128xf32> to vector<8x128xf32>
    %234 = vector.extract_strided_slice %232 {offsets = [8, 0], sizes = [8, 128], strides = [1, 1]} : vector<64x128xf32> to vector<8x128xf32>
    %235 = arith.addf %233, %234 : vector<8x128xf32>
    %236 = vector.extract_strided_slice %232 {offsets = [16, 0], sizes = [8, 128], strides = [1, 1]} : vector<64x128xf32> to vector<8x128xf32>
    %237 = arith.addf %235, %236 : vector<8x128xf32>
    %238 = vector.extract_strided_slice %232 {offsets = [24, 0], sizes = [8, 128], strides = [1, 1]} : vector<64x128xf32> to vector<8x128xf32>
    %239 = arith.addf %237, %238 : vector<8x128xf32>
    %240 = vector.extract_strided_slice %232 {offsets = [32, 0], sizes = [8, 128], strides = [1, 1]} : vector<64x128xf32> to vector<8x128xf32>
    %241 = arith.addf %239, %240 : vector<8x128xf32>
    %242 = vector.extract_strided_slice %232 {offsets = [40, 0], sizes = [8, 128], strides = [1, 1]} : vector<64x128xf32> to vector<8x128xf32>
    %243 = arith.addf %241, %242 : vector<8x128xf32>
    %244 = vector.extract_strided_slice %232 {offsets = [48, 0], sizes = [8, 128], strides = [1, 1]} : vector<64x128xf32> to vector<8x128xf32>
    %245 = arith.addf %243, %244 : vector<8x128xf32>
    %246 = vector.extract_strided_slice %232 {offsets = [56, 0], sizes = [8, 128], strides = [1, 1]} : vector<64x128xf32> to vector<8x128xf32>
    %247 = arith.addf %245, %246 : vector<8x128xf32>
    %248 = arith.addf %217, %247 : vector<8x128xf32>
    %c8_i32 = arith.constant 8 : i32
    %c0_38 = arith.constant 0 : index
    %c0_39 = arith.constant 0 : index
    %249 = vector.load %arg2[%c0_38, %c0_39] : memref<8x128xf32, #tpu.memory_space<vmem>>, vector<8x128xf32>
    tpu.vector_store %arg2[%c0_38, %c0_39], %248 {strides = array<i32>} : memref<8x128xf32, #tpu.memory_space<vmem>>, vector<8x128xf32>,
    return
  }
  func.func @transform_0(%arg0: i32) -> (i32, i32) {
    %c0_i32 = arith.constant 0 : i32
    %c0_i32_0 = arith.constant 0 : i32
    return %arg0, %c0_i32 : i32, i32
  }
  func.func @transform_1(%arg0: i32) -> (i32, i32) {
    %c0_i32 = arith.constant 0 : i32
    %c0_i32_0 = arith.constant 0 : i32
    return %arg0, %c0_i32 : i32, i32
  }
}

</mosaic_0001>

<llo_original>
// kernel: tpu_custom_call.1
$region0: #{tpu_custom_call.1}
  #allocation0 [shape = 'u32[]', space=smem, size = 0x4, offset = 0x4, fixed_abs, tag = 'smem constant byte address 0x4 - core index']
  #allocation1 [shape = 'u32[72,128]{1,0:T(1,128)}', space=vmem, size = 0x9000, scoped, tag = 'internal scratch']
  %s0 = inlined_call_operand.hbm [shape: f32[1024,128], index: 0, kind: input, shape index: {}]
  %s1 = inlined_call_operand.hbm [shape: f32[16,128], index: 1, kind: output, shape index: {}]
  %s2 = sld [smem:[#allocation0]]
  $region41: #{tpu_custom_call.1} parent=0
    _
  %s4 = ssub.s32 1, %s2
  %s5 = scalar_select 0, %s4, %s2
  $region1: #{tpu_custom_call.1} parent=0
    #allocation2 [shape = 'u8[524288]{0}', space=vmem, size = 0x80000, scoped, tag = 'input window, operand 0']
    #allocation3 [shape = 's32[2]{0}', space=sflag, size = 0x8, scoped, tag = 'scoped memory for tpu_custom_call.1']
    #allocation4 [shape = 's32[2]{0}', space=sflag, size = 0x8, scoped, tag = 'scoped memory for tpu_custom_call.1']
    #allocation5 [shape = 'u8[8192]{0}', space=vmem, size = 0x2000, scoped, tag = 'output window, operand 0']
    %6 = vsyncpa [#allocation3], 0
    %s7 = scalar_lea.sflag [#allocation3], 1
    %8 = vsyncpa %s7, 0
    %9 = vsyncpa [#allocation4], 0
    %s10 = scalar_lea.sflag [#allocation4], 1
    %11 = vsyncpa %s10, 0
    loop: start=0, step=1, limit=4
    $region2: #{tpu_custom_call.1} parent=1 // loop_pre_header
      _
    $region3: #{tpu_custom_call.1} parent=1 // loop_header
      %s13 = sphi 0, %s17
      %p14 = scmp.ge.s32.totalorder %s13, 4
      %s23 = sphi 0, %s25
      %s26 = sphi 0, %s23
      %s27 = sphi 0, %s26
      %s43 = sphi 0, %s27
      %s49 = sphi 0, %s51
      %s52 = sphi 0, %s49
      %s53 = sphi 0, %s52
      %s69 = sphi 0, %s53
    $region4: #{tpu_custom_call.1} parent=1 // loop_header_branch
      %16 = sbr.rel (%p14) target = $region8
    $region5: #{tpu_custom_call.1} parent=1 // loop_body
      %s18 = ssub.s32 %s13, 1
      %s19 = ssub.s32 %s13, 2
      %s20 = sadd.s32 %s13, 1
      %s21 = ssub.s32 %s13, %s20
      %p22 = scmp.eq.s32.totalorder %s21, 0
      %s24 = sadd.s32 %s23, 1
      %s25 = scalar_select %p22, %s23, %s24
      %p28 = pneg %p22
      %p29 = scmp.eq.s32.totalorder %s13, 1
      %p30 = por %p28, %p29
      %p31 = scmp.ne.s32.totalorder %s23, %s26
      %p32 = scmp.eq.s32.totalorder %s13, 0
      %p33 = por %p31, %p32
      %p34 = scmp.ne.s32.totalorder %s23, %s26
      %p35 = scmp.eq.s32.totalorder %s18, 1
      %p36 = por %p34, %p35
      %p37 = scmp.ne.s32.totalorder %s26, %s27
      %p38 = scmp.eq.s32.totalorder %s18, 0
      %p39 = por %p37, %p38
      %p40 = scmp.ne.s32.totalorder %s26, %s27
      %p41 = scmp.eq.s32.totalorder %s19, 1
      %p42 = por %p40, %p41
      %p44 = scmp.ne.s32.totalorder %s27, %s43
      %p45 = scmp.eq.s32.totalorder %s19, 0
      %p46 = por %p44, %p45
      %s47 = ssub.s32 %s13, %s20
      %p48 = scmp.eq.s32.totalorder %s47, 0
      %s50 = sadd.s32 %s49, 1
      %s51 = scalar_select %p48, %s49, %s50
      %p54 = pneg %p48
      %p55 = scmp.eq.s32.totalorder %s13, 1
      %p56 = por %p54, %p55
      %p57 = scmp.ne.s32.totalorder %s49, %s52
      %p58 = scmp.eq.s32.totalorder %s13, 0
      %p59 = por %p57, %p58
      %p60 = scmp.ne.s32.totalorder %s49, %s52
      %p61 = scmp.eq.s32.totalorder %s18, 1
      %p62 = por %p60, %p61
      %p63 = scmp.ne.s32.totalorder %s52, %s53
      %p64 = scmp.eq.s32.totalorder %s18, 0
      %p65 = por %p63, %p64
      %p66 = scmp.ne.s32.totalorder %s52, %s53
      %p67 = scmp.eq.s32.totalorder %s19, 1
      %p68 = por %p66, %p67
      %p70 = scmp.ne.s32.totalorder %s53, %s69
      %p71 = scmp.eq.s32.totalorder %s19, 0
      %p72 = por %p70, %p71
      %p73 = scmp.le.s32.totalorder 1, %s13
      %p74 = scmp.lt.s32.totalorder %s13, 3
      %p75 = pnand %p73, %p74
      %p76 = pneg %p75
      // Predicated region
      $region9: #{tpu_custom_call.1} parent=5 // pred_check
        _
      $region10: #{tpu_custom_call.1} parent=5 // pred_check_branch
        %78 = sbr.rel (%p75) target = $region12
      $region11: #{tpu_custom_call.1} parent=5 // pred_region
        %s79 = ssub.s32 %s13, 1
      $region12: #{tpu_custom_call.1} parent=5 // pred_fallthru
        _
      %p80 = scmp.lt.s32.totalorder %s13, 2
      // Predicated region
      $region13: #{tpu_custom_call.1} parent=5 // pred_check
        %p81 = pneg %p80
      $region14: #{tpu_custom_call.1} parent=5 // pred_check_branch
        %83 = sbr.rel (%p81) target = $region16
      $region15: #{tpu_custom_call.1} parent=5 // pred_region
        // Predicated region
        $region17: #{tpu_custom_call.1} parent=15 // pred_check
          %p84 = pneg %p33
        $region18: #{tpu_custom_call.1} parent=15 // pred_check_branch
          %86 = sbr.rel (%p84) target = $region20
        $region19: #{tpu_custom_call.1} parent=15 // pred_region
          %s87 = sand.u32 %s23, 1
          %s88 = scalar_lea.sflag [#allocation3], %s87
          %s89 = sand.u32 %s23, 1
          %s90 = smul.addr %s89, 512
          %s91 = scalar_lea.vmem [#allocation2], %s90
          %s92 = smul.u32 64, %s13
          %94 = vsyncadd %s88, 0
          %s95 = smul.addr %s92, 8
          %s96 = scalar_lea.hbm %s0, %s95
          %s97 = sshll.u32 %s96, 4
          %s98 = int_to_ptr.hbm [resolvable:$true] %s97
          %s99 = sshll.u32 %s91, 4
          %s100 = int_to_ptr.vmem [resolvable:$true] %s99
          %105 = dma.hbm_to_vmem [thread:$0]  %s98, 8192, %s100, %s88, 128, 128, 8
        $region20: #{tpu_custom_call.1} parent=15 // pred_fallthru
          _
      $region16: #{tpu_custom_call.1} parent=5 // pred_fallthru
        _
      %p106 = scmp.le.s32.totalorder 1, %s13
      %p107 = scmp.lt.s32.totalorder %s13, 3
      %p108 = pnand %p106, %p107
      %p109 = pneg %p108
      // Predicated region
      $region21: #{tpu_custom_call.1} parent=5 // pred_check
        _
      $region22: #{tpu_custom_call.1} parent=5 // pred_check_branch
        %111 = sbr.rel (%p108) target = $region24
      $region23: #{tpu_custom_call.1} parent=5 // pred_region
        %s112 = ssub.s32 %s13, 1
        %s113 = sand.u32 %s26, 1
        %s114 = scalar_lea.sflag [#allocation3], %s113
        %s115 = sand.u32 %s26, 1
        %s116 = smul.addr %s115, 512
        %s117 = scalar_lea.vmem [#allocation2], %s116
        // Predicated region
        $region25: #{tpu_custom_call.1} parent=23 // pred_check
          %p118 = pneg %p39
        $region26: #{tpu_custom_call.1} parent=23 // pred_check_branch
          %120 = sbr.rel (%p118) target = $region28
        $region27: #{tpu_custom_call.1} parent=23 // pred_region
          %122 = dma.done %s114, 8192
        $region28: #{tpu_custom_call.1} parent=23 // pred_fallthru
          _
        %s123 = sand.u32 %s26, 1
        %s124 = scalar_lea.sflag [#allocation3], %s123
        %s125 = sand.u32 %s26, 1
        %s126 = smul.addr %s125, 512
        %s127 = scalar_lea.vmem [#allocation2], %s126
        %p128 = pneg %p39
        %p129 = pneg %p36
        %p130 = pneg %p65
        %p131 = pneg %p62
        %s132 = sand.u32 %s52, 1
        %s133 = scalar_lea.sflag [#allocation4], %s132
        %s134 = sand.u32 %s52, 1
        %s135 = smul.addr %s134, 8
        %s136 = scalar_lea.vmem [#allocation5], %s135
        %s137 = smul.u32 64, %s18
        %v138 = vld [vmem:[%s117] sm:$0xff]
        %v139 = vld [vmem:[%s117 + $0x8] sm:$0xff]
        %v140 = vld [vmem:[%s117 + $0x10] sm:$0xff]
        %v141 = vld [vmem:[%s117 + $0x18] sm:$0xff]
        %v142 = vld [vmem:[%s117 + $0x20] sm:$0xff]
        %v143 = vld [vmem:[%s117 + $0x28] sm:$0xff]
        %v144 = vld [vmem:[%s117 + $0x30] sm:$0xff]
        %v145 = vld [vmem:[%s117 + $0x38] sm:$0xff]
        %v146 = vmax.f32 %v138, 0.0
        %v147 = vmax.f32 %v139, 0.0
        %v148 = vmax.f32 %v140, 0.0
        %v149 = vmax.f32 %v141, 0.0
        %v150 = vmax.f32 %v142, 0.0
        %v151 = vmax.f32 %v143, 0.0
        %v152 = vmax.f32 %v144, 0.0
        %v153 = vmax.f32 %v145, 0.0
        %v154 = vsub.f32 %v146, %v138
        %v155 = vsub.f32 %v147, %v139
        %v156 = vsub.f32 %v148, %v140
        %v157 = vsub.f32 %v149, %v141
        %v158 = vsub.f32 %v150, %v142
        %v159 = vsub.f32 %v151, %v143
        %v160 = vsub.f32 %v152, %v144
        %v161 = vsub.f32 %v153, %v145
        %v162 = vand.u32 2147483647, %v138
        %v163 = vand.u32 2147483647, %v139
        %v164 = vand.u32 2147483647, %v140
        %v165 = vand.u32 2147483647, %v141
        %v166 = vand.u32 2147483647, %v142
        %v167 = vand.u32 2147483647, %v143
        %v168 = vand.u32 2147483647, %v144
        %v169 = vand.u32 2147483647, %v145
        %v170 = vsub.f32 0.0, %v162
        %v171 = vsub.f32 0.0, %v163
        %v172 = vsub.f32 0.0, %v164
        %v173 = vsub.f32 0.0, %v165
        %v174 = vsub.f32 0.0, %v166
        %v175 = vsub.f32 0.0, %v167
        %v176 = vsub.f32 0.0, %v168
        %v177 = vsub.f32 0.0, %v169
        %v178 = vmul.f32 %v170, 1.442695
        %v179 = vpow.pop %v178
        %v180 = vmul.f32 %v171, 1.442695
        %v181 = vpow.pop %v180
        %v182 = vmul.f32 %v172, 1.442695
        %v183 = vpow.pop %v182
        %v184 = vmul.f32 %v173, 1.442695
        %v185 = vpow.pop %v184
        %v186 = vmul.f32 %v174, 1.442695
        %v187 = vpow.pop %v186
        %v188 = vmul.f32 %v175, 1.442695
        %v189 = vpow.pop %v188
        %v190 = vmul.f32 %v176, 1.442695
        %v191 = vpow.pop %v190
        %v192 = vmul.f32 %v177, 1.442695
        %v193 = vpow.pop %v192
        %v194 = vadd.f32 %v179, 1.0
        %v195 = vlog2.pop %v194
        %v196 = vmul.f32 %v195, 0.6931472
        %v197 = vmul.f32 -0.5, %v179
        %v198 = vadd.f32 %v197, 1.0
        %v199 = vmul.f32 %v198, %v179
        %v200 = vand.u32 2147483647, %v179
        %vm201 = vcmp.lt.f32.partialorder %v200, 0.0004427343
        %v202 = vsel %vm201, %v199, %v196
        %v203 = vadd.f32 %v181, 1.0
        %v204 = vlog2.pop %v203
        %v205 = vmul.f32 %v204, 0.6931472
        %v206 = vmul.f32 -0.5, %v181
        %v207 = vadd.f32 %v206, 1.0
        %v208 = vmul.f32 %v207, %v181
        %v209 = vand.u32 2147483647, %v181
        %vm210 = vcmp.lt.f32.partialorder %v209, 0.0004427343
        %v211 = vsel %vm210, %v208, %v205
        %v212 = vadd.f32 %v183, 1.0
        %v213 = vlog2.pop %v212
        %v214 = vmul.f32 %v213, 0.6931472
        %v215 = vmul.f32 -0.5, %v183
        %v216 = vadd.f32 %v215, 1.0
        %v217 = vmul.f32 %v216, %v183
        %v218 = vand.u32 2147483647, %v183
        %vm219 = vcmp.lt.f32.partialorder %v218, 0.0004427343
        %v220 = vsel %vm219, %v217, %v214
        %v221 = vadd.f32 %v185, 1.0
        %v222 = vlog2.pop %v221
        %v223 = vmul.f32 %v222, 0.6931472
        %v224 = vmul.f32 -0.5, %v185
        %v225 = vadd.f32 %v224, 1.0
        %v226 = vmul.f32 %v225, %v185
        %v227 = vand.u32 2147483647, %v185
        %vm228 = vcmp.lt.f32.partialorder %v227, 0.0004427343
        %v229 = vsel %vm228, %v226, %v223
        %v230 = vadd.f32 %v187, 1.0
        %v231 = vlog2.pop %v230
        %v232 = vmul.f32 %v231, 0.6931472
        %v233 = vmul.f32 -0.5, %v187
        %v234 = vadd.f32 %v233, 1.0
        %v235 = vmul.f32 %v234, %v187
        %v236 = vand.u32 2147483647, %v187
        %vm237 = vcmp.lt.f32.partialorder %v236, 0.0004427343
        %v238 = vsel %vm237, %v235, %v232
        %v239 = vadd.f32 %v189, 1.0
        %v240 = vlog2.pop %v239
        %v241 = vmul.f32 %v240, 0.6931472
        %v242 = vmul.f32 -0.5, %v189
        %v243 = vadd.f32 %v242, 1.0
        %v244 = vmul.f32 %v243, %v189
        %v245 = vand.u32 2147483647, %v189
        %vm246 = vcmp.lt.f32.partialorder %v245, 0.0004427343
        %v247 = vsel %vm246, %v244, %v241
        %v248 = vadd.f32 %v191, 1.0
        %v249 = vlog2.pop %v248
        %v250 = vmul.f32 %v249, 0.6931472
        %v251 = vmul.f32 -0.5, %v191
        %v252 = vadd.f32 %v251, 1.0
        %v253 = vmul.f32 %v252, %v191
        %v254 = vand.u32 2147483647, %v191
        %vm255 = vcmp.lt.f32.partialorder %v254, 0.0004427343
        %v256 = vsel %vm255, %v253, %v250
        %v257 = vadd.f32 %v193, 1.0
        %v258 = vlog2.pop %v257
        %v259 = vmul.f32 %v258, 0.6931472
        %v260 = vmul.f32 -0.5, %v193
        %v261 = vadd.f32 %v260, 1.0
        %v262 = vmul.f32 %v261, %v193
        %v263 = vand.u32 2147483647, %v193
        %vm264 = vcmp.lt.f32.partialorder %v263, 0.0004427343
        %v265 = vsel %vm264, %v262, %v259
        %v266 = vadd.f32 %v154, %v202
        %v267 = vadd.f32 %v155, %v211
        %v268 = vadd.f32 %v156, %v220
        %v269 = vadd.f32 %v157, %v229
        %v270 = vadd.f32 %v158, %v238
        %v271 = vadd.f32 %v159, %v247
        %v272 = vadd.f32 %v160, %v256
        %v273 = vadd.f32 %v161, %v265
        %v274 = vadd.f32 %v266, %v267
        %v275 = vadd.f32 %v274, %v268
        %v276 = vadd.f32 %v275, %v269
        %v277 = vadd.f32 %v276, %v270
        %v278 = vadd.f32 %v277, %v271
        %v279 = vadd.f32 %v278, %v272
        %v280 = vadd.f32 %v279, %v273
        %v281 = vadd.f32 %v280, 0.0
        %s282 = scalar_lea.vmem %s117, 64 [#allocation2]
        %v283 = vld [vmem:[%s282] sm:$0xff]
        %v284 = vld [vmem:[%s282 + $0x8] sm:$0xff]
        %v285 = vld [vmem:[%s282 + $0x10] sm:$0xff]
        %v286 = vld [vmem:[%s282 + $0x18] sm:$0xff]
        %v287 = vld [vmem:[%s282 + $0x20] sm:$0xff]
        %v288 = vld [vmem:[%s282 + $0x28] sm:$0xff]
        %v289 = vld [vmem:[%s282 + $0x30] sm:$0xff]
        %v290 = vld [vmem:[%s282 + $0x38] sm:$0xff]
        %v291 = vmax.f32 %v283, 0.0
        %v292 = vmax.f32 %v284, 0.0
        %v293 = vmax.f32 %v285, 0.0
        %v294 = vmax.f32 %v286, 0.0
        %v295 = vmax.f32 %v287, 0.0
        %v296 = vmax.f32 %v288, 0.0
        %v297 = vmax.f32 %v289, 0.0
        %v298 = vmax.f32 %v290, 0.0
        %v299 = vsub.f32 %v291, %v283
        %v300 = vsub.f32 %v292, %v284
        %v301 = vsub.f32 %v293, %v285
        %v302 = vsub.f32 %v294, %v286
        %v303 = vsub.f32 %v295, %v287
        %v304 = vsub.f32 %v296, %v288
        %v305 = vsub.f32 %v297, %v289
        %v306 = vsub.f32 %v298, %v290
        %v307 = vand.u32 2147483647, %v283
        %v308 = vand.u32 2147483647, %v284
        %v309 = vand.u32 2147483647, %v285
        %v310 = vand.u32 2147483647, %v286
        %v311 = vand.u32 2147483647, %v287
        %v312 = vand.u32 2147483647, %v288
        %v313 = vand.u32 2147483647, %v289
        %v314 = vand.u32 2147483647, %v290
        %v315 = vsub.f32 0.0, %v307
        %v316 = vsub.f32 0.0, %v308
        %v317 = vsub.f32 0.0, %v309
        %v318 = vsub.f32 0.0, %v310
        %v319 = vsub.f32 0.0, %v311
        %v320 = vsub.f32 0.0, %v312
        %v321 = vsub.f32 0.0, %v313
        %v322 = vsub.f32 0.0, %v314
        %v323 = vmul.f32 %v315, 1.442695
        %v324 = vpow.pop %v323
        %v325 = vmul.f32 %v316, 1.442695
        %v326 = vpow.pop %v325
        %v327 = vmul.f32 %v317, 1.442695
        %v328 = vpow.pop %v327
        %v329 = vmul.f32 %v318, 1.442695
        %v330 = vpow.pop %v329
        %v331 = vmul.f32 %v319, 1.442695
        %v332 = vpow.pop %v331
        %v333 = vmul.f32 %v320, 1.442695
        %v334 = vpow.pop %v333
        %v335 = vmul.f32 %v321, 1.442695
        %v336 = vpow.pop %v335
        %v337 = vmul.f32 %v322, 1.442695
        %v338 = vpow.pop %v337
        %v339 = vadd.f32 %v324, 1.0
        %v340 = vlog2.pop %v339
        %v341 = vmul.f32 %v340, 0.6931472
        %v342 = vmul.f32 -0.5, %v324
        %v343 = vadd.f32 %v342, 1.0
        %v344 = vmul.f32 %v343, %v324
        %v345 = vand.u32 2147483647, %v324
        %vm346 = vcmp.lt.f32.partialorder %v345, 0.0004427343
        %v347 = vsel %vm346, %v344, %v341
        %v348 = vadd.f32 %v326, 1.0
        %v349 = vlog2.pop %v348
        %v350 = vmul.f32 %v349, 0.6931472
        %v351 = vmul.f32 -0.5, %v326
        %v352 = vadd.f32 %v351, 1.0
        %v353 = vmul.f32 %v352, %v326
        %v354 = vand.u32 2147483647, %v326
        %vm355 = vcmp.lt.f32.partialorder %v354, 0.0004427343
        %v356 = vsel %vm355, %v353, %v350
        %v357 = vadd.f32 %v328, 1.0
        %v358 = vlog2.pop %v357
        %v359 = vmul.f32 %v358, 0.6931472
        %v360 = vmul.f32 -0.5, %v328
        %v361 = vadd.f32 %v360, 1.0
        %v362 = vmul.f32 %v361, %v328
        %v363 = vand.u32 2147483647, %v328
        %vm364 = vcmp.lt.f32.partialorder %v363, 0.0004427343
        %v365 = vsel %vm364, %v362, %v359
        %v366 = vadd.f32 %v330, 1.0
        %v367 = vlog2.pop %v366
        %v368 = vmul.f32 %v367, 0.6931472
        %v369 = vmul.f32 -0.5, %v330
        %v370 = vadd.f32 %v369, 1.0
        %v371 = vmul.f32 %v370, %v330
        %v372 = vand.u32 2147483647, %v330
        %vm373 = vcmp.lt.f32.partialorder %v372, 0.0004427343
        %v374 = vsel %vm373, %v371, %v368
        %v375 = vadd.f32 %v332, 1.0
        %v376 = vlog2.pop %v375
        %v377 = vmul.f32 %v376, 0.6931472
        %v378 = vmul.f32 -0.5, %v332
        %v379 = vadd.f32 %v378, 1.0
        %v380 = vmul.f32 %v379, %v332
        %v381 = vand.u32 2147483647, %v332
        %vm382 = vcmp.lt.f32.partialorder %v381, 0.0004427343
        %v383 = vsel %vm382, %v380, %v377
        %v384 = vadd.f32 %v334, 1.0
        %v385 = vlog2.pop %v384
        %v386 = vmul.f32 %v385, 0.6931472
        %v387 = vmul.f32 -0.5, %v334
        %v388 = vadd.f32 %v387, 1.0
        %v389 = vmul.f32 %v388, %v334
        %v390 = vand.u32 2147483647, %v334
        %vm391 = vcmp.lt.f32.partialorder %v390, 0.0004427343
        %v392 = vsel %vm391, %v389, %v386
        %v393 = vadd.f32 %v336, 1.0
        %v394 = vlog2.pop %v393
        %v395 = vmul.f32 %v394, 0.6931472
        %v396 = vmul.f32 -0.5, %v336
        %v397 = vadd.f32 %v396, 1.0
        %v398 = vmul.f32 %v397, %v336
        %v399 = vand.u32 2147483647, %v336
        %vm400 = vcmp.lt.f32.partialorder %v399, 0.0004427343
        %v401 = vsel %vm400, %v398, %v395
        %v402 = vadd.f32 %v338, 1.0
        %v403 = vlog2.pop %v402
        %v404 = vmul.f32 %v403, 0.6931472
        %v405 = vmul.f32 -0.5, %v338
        %v406 = vadd.f32 %v405, 1.0
        %v407 = vmul.f32 %v406, %v338
        %v408 = vand.u32 2147483647, %v338
        %vm409 = vcmp.lt.f32.partialorder %v408, 0.0004427343
        %v410 = vsel %vm409, %v407, %v404
        %v411 = vadd.f32 %v299, %v347
        %v412 = vadd.f32 %v300, %v356
        %v413 = vadd.f32 %v301, %v365
        %v414 = vadd.f32 %v302, %v374
        %v415 = vadd.f32 %v303, %v383
        %v416 = vadd.f32 %v304, %v392
        %v417 = vadd.f32 %v305, %v401
        %v418 = vadd.f32 %v306, %v410
        %v419 = vadd.f32 %v411, %v412
        %v420 = vadd.f32 %v419, %v413
        %v421 = vadd.f32 %v420, %v414
        %v422 = vadd.f32 %v421, %v415
        %v423 = vadd.f32 %v422, %v416
        %v424 = vadd.f32 %v423, %v417
        %v425 = vadd.f32 %v424, %v418
        %v426 = vadd.f32 %v281, %v425
        %s427 = scalar_lea.vmem %s117, 128 [#allocation2]
        %v428 = vld [vmem:[%s427] sm:$0xff]
        %v429 = vld [vmem:[%s427 + $0x8] sm:$0xff]
        %v430 = vld [vmem:[%s427 + $0x10] sm:$0xff]
        %v431 = vld [vmem:[%s427 + $0x18] sm:$0xff]
        %v432 = vld [vmem:[%s427 + $0x20] sm:$0xff]
        %v433 = vld [vmem:[%s427 + $0x28] sm:$0xff]
        %v434 = vld [vmem:[%s427 + $0x30] sm:$0xff]
        %v435 = vld [vmem:[%s427 + $0x38] sm:$0xff]
        %v436 = vmax.f32 %v428, 0.0
        %v437 = vmax.f32 %v429, 0.0
        %v438 = vmax.f32 %v430, 0.0
        %v439 = vmax.f32 %v431, 0.0
        %v440 = vmax.f32 %v432, 0.0
        %v441 = vmax.f32 %v433, 0.0
        %v442 = vmax.f32 %v434, 0.0
        %v443 = vmax.f32 %v435, 0.0
        %v444 = vsub.f32 %v436, %v428
        %v445 = vsub.f32 %v437, %v429
        %v446 = vsub.f32 %v438, %v430
        %v447 = vsub.f32 %v439, %v431
        %v448 = vsub.f32 %v440, %v432
        %v449 = vsub.f32 %v441, %v433
        %v450 = vsub.f32 %v442, %v434
        %v451 = vsub.f32 %v443, %v435
        %v452 = vand.u32 2147483647, %v428
        %v453 = vand.u32 2147483647, %v429
        %v454 = vand.u32 2147483647, %v430
        %v455 = vand.u32 2147483647, %v431
        %v456 = vand.u32 2147483647, %v432
        %v457 = vand.u32 2147483647, %v433
        %v458 = vand.u32 2147483647, %v434
        %v459 = vand.u32 2147483647, %v435
        %v460 = vsub.f32 0.0, %v452
        %v461 = vsub.f32 0.0, %v453
        %v462 = vsub.f32 0.0, %v454
        %v463 = vsub.f32 0.0, %v455
        %v464 = vsub.f32 0.0, %v456
        %v465 = vsub.f32 0.0, %v457
        %v466 = vsub.f32 0.0, %v458
        %v467 = vsub.f32 0.0, %v459
        %v468 = vmul.f32 %v460, 1.442695
        %v469 = vpow.pop %v468
        %v470 = vmul.f32 %v461, 1.442695
        %v471 = vpow.pop %v470
        %v472 = vmul.f32 %v462, 1.442695
        %v473 = vpow.pop %v472
        %v474 = vmul.f32 %v463, 1.442695
        %v475 = vpow.pop %v474
        %v476 = vmul.f32 %v464, 1.442695
        %v477 = vpow.pop %v476
        %v478 = vmul.f32 %v465, 1.442695
        %v479 = vpow.pop %v478
        %v480 = vmul.f32 %v466, 1.442695
        %v481 = vpow.pop %v480
        %v482 = vmul.f32 %v467, 1.442695
        %v483 = vpow.pop %v482
        %v484 = vadd.f32 %v469, 1.0
        %v485 = vlog2.pop %v484
        %v486 = vmul.f32 %v485, 0.6931472
        %v487 = vmul.f32 -0.5, %v469
        %v488 = vadd.f32 %v487, 1.0
        %v489 = vmul.f32 %v488, %v469
        %v490 = vand.u32 2147483647, %v469
        %vm491 = vcmp.lt.f32.partialorder %v490, 0.0004427343
        %v492 = vsel %vm491, %v489, %v486
        %v493 = vadd.f32 %v471, 1.0
        %v494 = vlog2.pop %v493
        %v495 = vmul.f32 %v494, 0.6931472
        %v496 = vmul.f32 -0.5, %v471
        %v497 = vadd.f32 %v496, 1.0
        %v498 = vmul.f32 %v497, %v471
        %v499 = vand.u32 2147483647, %v471
        %vm500 = vcmp.lt.f32.partialorder %v499, 0.0004427343
        %v501 = vsel %vm500, %v498, %v495
        %v502 = vadd.f32 %v473, 1.0
        %v503 = vlog2.pop %v502
        %v504 = vmul.f32 %v503, 0.6931472
        %v505 = vmul.f32 -0.5, %v473
        %v506 = vadd.f32 %v505, 1.0
        %v507 = vmul.f32 %v506, %v473
        %v508 = vand.u32 2147483647, %v473
        %vm509 = vcmp.lt.f32.partialorder %v508, 0.0004427343
        %v510 = vsel %vm509, %v507, %v504
        %v511 = vadd.f32 %v475, 1.0
        %v512 = vlog2.pop %v511
        %v513 = vmul.f32 %v512, 0.6931472
        %v514 = vmul.f32 -0.5, %v475
        %v515 = vadd.f32 %v514, 1.0
        %v516 = vmul.f32 %v515, %v475
        %v517 = vand.u32 2147483647, %v475
        %vm518 = vcmp.lt.f32.partialorder %v517, 0.0004427343
        %v519 = vsel %vm518, %v516, %v513
        %v520 = vadd.f32 %v477, 1.0
        %v521 = vlog2.pop %v520
        %v522 = vmul.f32 %v521, 0.6931472
        %v523 = vmul.f32 -0.5, %v477
        %v524 = vadd.f32 %v523, 1.0
        %v525 = vmul.f32 %v524, %v477
        %v526 = vand.u32 2147483647, %v477
        %vm527 = vcmp.lt.f32.partialorder %v526, 0.0004427343
        %v528 = vsel %vm527, %v525, %v522
        %v529 = vadd.f32 %v479, 1.0
        %v530 = vlog2.pop %v529
        %v531 = vmul.f32 %v530, 0.6931472
        %v532 = vmul.f32 -0.5, %v479
        %v533 = vadd.f32 %v532, 1.0
        %v534 = vmul.f32 %v533, %v479
        %v535 = vand.u32 2147483647, %v479
        %vm536 = vcmp.lt.f32.partialorder %v535, 0.0004427343
        %v537 = vsel %vm536, %v534, %v531
        %v538 = vadd.f32 %v481, 1.0
        %v539 = vlog2.pop %v538
        %v540 = vmul.f32 %v539, 0.6931472
        %v541 = vmul.f32 -0.5, %v481
        %v542 = vadd.f32 %v541, 1.0
        %v543 = vmul.f32 %v542, %v481
        %v544 = vand.u32 2147483647, %v481
        %vm545 = vcmp.lt.f32.partialorder %v544, 0.0004427343
        %v546 = vsel %vm545, %v543, %v540
        %v547 = vadd.f32 %v483, 1.0
        %v548 = vlog2.pop %v547
        %v549 = vmul.f32 %v548, 0.6931472
        %v550 = vmul.f32 -0.5, %v483
        %v551 = vadd.f32 %v550, 1.0
        %v552 = vmul.f32 %v551, %v483
        %v553 = vand.u32 2147483647, %v483
        %vm554 = vcmp.lt.f32.partialorder %v553, 0.0004427343
        %v555 = vsel %vm554, %v552, %v549
        %v556 = vadd.f32 %v444, %v492
        %v557 = vadd.f32 %v445, %v501
        %v558 = vadd.f32 %v446, %v510
        %v559 = vadd.f32 %v447, %v519
        %v560 = vadd.f32 %v448, %v528
        %v561 = vadd.f32 %v449, %v537
        %v562 = vadd.f32 %v450, %v546
        %v563 = vadd.f32 %v451, %v555
        %v564 = vadd.f32 %v556, %v557
        %v565 = vadd.f32 %v564, %v558
        %v566 = vadd.f32 %v565, %v559
        %v567 = vadd.f32 %v566, %v560
        %v568 = vadd.f32 %v567, %v561
        %v569 = vadd.f32 %v568, %v562
        %v570 = vadd.f32 %v569, %v563
        %v571 = vadd.f32 %v426, %v570
        %s572 = scalar_lea.vmem %s117, 192 [#allocation2]
        %v573 = vld [vmem:[%s572] sm:$0xff]
        %v574 = vld [vmem:[%s572 + $0x8] sm:$0xff]
        %v575 = vld [vmem:[%s572 + $0x10] sm:$0xff]
        %v576 = vld [vmem:[%s572 + $0x18] sm:$0xff]
        %v577 = vld [vmem:[%s572 + $0x20] sm:$0xff]
        %v578 = vld [vmem:[%s572 + $0x28] sm:$0xff]
        %v579 = vld [vmem:[%s572 + $0x30] sm:$0xff]
        %v580 = vld [vmem:[%s572 + $0x38] sm:$0xff]
        %v581 = vmax.f32 %v573, 0.0
        %v582 = vmax.f32 %v574, 0.0
        %v583 = vmax.f32 %v575, 0.0
        %v584 = vmax.f32 %v576, 0.0
        %v585 = vmax.f32 %v577, 0.0
        %v586 = vmax.f32 %v578, 0.0
        %v587 = vmax.f32 %v579, 0.0
        %v588 = vmax.f32 %v580, 0.0
        %v589 = vsub.f32 %v581, %v573
        %v590 = vsub.f32 %v582, %v574
        %v591 = vsub.f32 %v583, %v575
        %v592 = vsub.f32 %v584, %v576
        %v593 = vsub.f32 %v585, %v577
        %v594 = vsub.f32 %v586, %v578
        %v595 = vsub.f32 %v587, %v579
        %v596 = vsub.f32 %v588, %v580
        %v597 = vand.u32 2147483647, %v573
        %v598 = vand.u32 2147483647, %v574
        %v599 = vand.u32 2147483647, %v575
        %v600 = vand.u32 2147483647, %v576
        %v601 = vand.u32 2147483647, %v577
        %v602 = vand.u32 2147483647, %v578
        %v603 = vand.u32 2147483647, %v579
        %v604 = vand.u32 2147483647, %v580
        %v605 = vsub.f32 0.0, %v597
        %v606 = vsub.f32 0.0, %v598
        %v607 = vsub.f32 0.0, %v599
        %v608 = vsub.f32 0.0, %v600
        %v609 = vsub.f32 0.0, %v601
        %v610 = vsub.f32 0.0, %v602
        %v611 = vsub.f32 0.0, %v603
        %v612 = vsub.f32 0.0, %v604
        %v613 = vmul.f32 %v605, 1.442695
        %v614 = vpow.pop %v613
        %v615 = vmul.f32 %v606, 1.442695
        %v616 = vpow.pop %v615
        %v617 = vmul.f32 %v607, 1.442695
        %v618 = vpow.pop %v617
        %v619 = vmul.f32 %v608, 1.442695
        %v620 = vpow.pop %v619
        %v621 = vmul.f32 %v609, 1.442695
        %v622 = vpow.pop %v621
        %v623 = vmul.f32 %v610, 1.442695
        %v624 = vpow.pop %v623
        %v625 = vmul.f32 %v611, 1.442695
        %v626 = vpow.pop %v625
        %v627 = vmul.f32 %v612, 1.442695
        %v628 = vpow.pop %v627
        %v629 = vadd.f32 %v614, 1.0
        %v630 = vlog2.pop %v629
        %v631 = vmul.f32 %v630, 0.6931472
        %v632 = vmul.f32 -0.5, %v614
        %v633 = vadd.f32 %v632, 1.0
        %v634 = vmul.f32 %v633, %v614
        %v635 = vand.u32 2147483647, %v614
        %vm636 = vcmp.lt.f32.partialorder %v635, 0.0004427343
        %v637 = vsel %vm636, %v634, %v631
        %v638 = vadd.f32 %v616, 1.0
        %v639 = vlog2.pop %v638
        %v640 = vmul.f32 %v639, 0.6931472
        %v641 = vmul.f32 -0.5, %v616
        %v642 = vadd.f32 %v641, 1.0
        %v643 = vmul.f32 %v642, %v616
        %v644 = vand.u32 2147483647, %v616
        %vm645 = vcmp.lt.f32.partialorder %v644, 0.0004427343
        %v646 = vsel %vm645, %v643, %v640
        %v647 = vadd.f32 %v618, 1.0
        %v648 = vlog2.pop %v647
        %v649 = vmul.f32 %v648, 0.6931472
        %v650 = vmul.f32 -0.5, %v618
        %v651 = vadd.f32 %v650, 1.0
        %v652 = vmul.f32 %v651, %v618
        %v653 = vand.u32 2147483647, %v618
        %vm654 = vcmp.lt.f32.partialorder %v653, 0.0004427343
        %v655 = vsel %vm654, %v652, %v649
        %v656 = vadd.f32 %v620, 1.0
        %v657 = vlog2.pop %v656
        %v658 = vmul.f32 %v657, 0.6931472
        %v659 = vmul.f32 -0.5, %v620
        %v660 = vadd.f32 %v659, 1.0
        %v661 = vmul.f32 %v660, %v620
        %v662 = vand.u32 2147483647, %v620
        %vm663 = vcmp.lt.f32.partialorder %v662, 0.0004427343
        %v664 = vsel %vm663, %v661, %v658
        %v665 = vadd.f32 %v622, 1.0
        %v666 = vlog2.pop %v665
        %v667 = vmul.f32 %v666, 0.6931472
        %v668 = vmul.f32 -0.5, %v622
        %v669 = vadd.f32 %v668, 1.0
        %v670 = vmul.f32 %v669, %v622
        %v671 = vand.u32 2147483647, %v622
        %vm672 = vcmp.lt.f32.partialorder %v671, 0.0004427343
        %v673 = vsel %vm672, %v670, %v667
        %v674 = vadd.f32 %v624, 1.0
        %v675 = vlog2.pop %v674
        %v676 = vmul.f32 %v675, 0.6931472
        %v677 = vmul.f32 -0.5, %v624
        %v678 = vadd.f32 %v677, 1.0
        %v679 = vmul.f32 %v678, %v624
        %v680 = vand.u32 2147483647, %v624
        %vm681 = vcmp.lt.f32.partialorder %v680, 0.0004427343
        %v682 = vsel %vm681, %v679, %v676
        %v683 = vadd.f32 %v626, 1.0
        %v684 = vlog2.pop %v683
        %v685 = vmul.f32 %v684, 0.6931472
        %v686 = vmul.f32 -0.5, %v626
        %v687 = vadd.f32 %v686, 1.0
        %v688 = vmul.f32 %v687, %v626
        %v689 = vand.u32 2147483647, %v626
        %vm690 = vcmp.lt.f32.partialorder %v689, 0.0004427343
        %v691 = vsel %vm690, %v688, %v685
        %v692 = vadd.f32 %v628, 1.0
        %v693 = vlog2.pop %v692
        %v694 = vmul.f32 %v693, 0.6931472
        %v695 = vmul.f32 -0.5, %v628
        %v696 = vadd.f32 %v695, 1.0
        %v697 = vmul.f32 %v696, %v628
        %v698 = vand.u32 2147483647, %v628
        %vm699 = vcmp.lt.f32.partialorder %v698, 0.0004427343
        %v700 = vsel %vm699, %v697, %v694
        %v701 = vadd.f32 %v589, %v637
        %v702 = vadd.f32 %v590, %v646
        %v703 = vadd.f32 %v591, %v655
        %v704 = vadd.f32 %v592, %v664
        %v705 = vadd.f32 %v593, %v673
        %v706 = vadd.f32 %v594, %v682
        %v707 = vadd.f32 %v595, %v691
        %v708 = vadd.f32 %v596, %v700
        %v709 = vadd.f32 %v701, %v702
        %v710 = vadd.f32 %v709, %v703
        %v711 = vadd.f32 %v710, %v704
        %v712 = vadd.f32 %v711, %v705
        %v713 = vadd.f32 %v712, %v706
        %v714 = vadd.f32 %v713, %v707
        %v715 = vadd.f32 %v714, %v708
        %v716 = vadd.f32 %v571, %v715
        %s717 = scalar_lea.vmem %s117, 256 [#allocation2]
        %v718 = vld [vmem:[%s717] sm:$0xff]
        %v719 = vld [vmem:[%s717 + $0x8] sm:$0xff]
        %v720 = vld [vmem:[%s717 + $0x10] sm:$0xff]
        %v721 = vld [vmem:[%s717 + $0x18] sm:$0xff]
        %v722 = vld [vmem:[%s717 + $0x20] sm:$0xff]
        %v723 = vld [vmem:[%s717 + $0x28] sm:$0xff]
        %v724 = vld [vmem:[%s717 + $0x30] sm:$0xff]
        %v725 = vld [vmem:[%s717 + $0x38] sm:$0xff]
        %v726 = vmax.f32 %v718, 0.0
        %v727 = vmax.f32 %v719, 0.0
        %v728 = vmax.f32 %v720, 0.0
        %v729 = vmax.f32 %v721, 0.0
        %v730 = vmax.f32 %v722, 0.0
        %v731 = vmax.f32 %v723, 0.0
        %v732 = vmax.f32 %v724, 0.0
        %v733 = vmax.f32 %v725, 0.0
        %v734 = vsub.f32 %v726, %v718
        %v735 = vsub.f32 %v727, %v719
        %v736 = vsub.f32 %v728, %v720
        %v737 = vsub.f32 %v729, %v721
        %v738 = vsub.f32 %v730, %v722
        %v739 = vsub.f32 %v731, %v723
        %v740 = vsub.f32 %v732, %v724
        %v741 = vsub.f32 %v733, %v725
        %v742 = vand.u32 2147483647, %v718
        %v743 = vand.u32 2147483647, %v719
        %v744 = vand.u32 2147483647, %v720
        %v745 = vand.u32 2147483647, %v721
        %v746 = vand.u32 2147483647, %v722
        %v747 = vand.u32 2147483647, %v723
        %v748 = vand.u32 2147483647, %v724
        %v749 = vand.u32 2147483647, %v725
        %v750 = vsub.f32 0.0, %v742
        %v751 = vsub.f32 0.0, %v743
        %v752 = vsub.f32 0.0, %v744
        %v753 = vsub.f32 0.0, %v745
        %v754 = vsub.f32 0.0, %v746
        %v755 = vsub.f32 0.0, %v747
        %v756 = vsub.f32 0.0, %v748
        %v757 = vsub.f32 0.0, %v749
        %v758 = vmul.f32 %v750, 1.442695
        %v759 = vpow.pop %v758
        %v760 = vmul.f32 %v751, 1.442695
        %v761 = vpow.pop %v760
        %v762 = vmul.f32 %v752, 1.442695
        %v763 = vpow.pop %v762
        %v764 = vmul.f32 %v753, 1.442695
        %v765 = vpow.pop %v764
        %v766 = vmul.f32 %v754, 1.442695
        %v767 = vpow.pop %v766
        %v768 = vmul.f32 %v755, 1.442695
        %v769 = vpow.pop %v768
        %v770 = vmul.f32 %v756, 1.442695
        %v771 = vpow.pop %v770
        %v772 = vmul.f32 %v757, 1.442695
        %v773 = vpow.pop %v772
        %v774 = vadd.f32 %v759, 1.0
        %v775 = vlog2.pop %v774
        %v776 = vmul.f32 %v775, 0.6931472
        %v777 = vmul.f32 -0.5, %v759
        %v778 = vadd.f32 %v777, 1.0
        %v779 = vmul.f32 %v778, %v759
        %v780 = vand.u32 2147483647, %v759
        %vm781 = vcmp.lt.f32.partialorder %v780, 0.0004427343
        %v782 = vsel %vm781, %v779, %v776
        %v783 = vadd.f32 %v761, 1.0
        %v784 = vlog2.pop %v783
        %v785 = vmul.f32 %v784, 0.6931472
        %v786 = vmul.f32 -0.5, %v761
        %v787 = vadd.f32 %v786, 1.0
        %v788 = vmul.f32 %v787, %v761
        %v789 = vand.u32 2147483647, %v761
        %vm790 = vcmp.lt.f32.partialorder %v789, 0.0004427343
        %v791 = vsel %vm790, %v788, %v785
        %v792 = vadd.f32 %v763, 1.0
        %v793 = vlog2.pop %v792
        %v794 = vmul.f32 %v793, 0.6931472
        %v795 = vmul.f32 -0.5, %v763
        %v796 = vadd.f32 %v795, 1.0
        %v797 = vmul.f32 %v796, %v763
        %v798 = vand.u32 2147483647, %v763
        %vm799 = vcmp.lt.f32.partialorder %v798, 0.0004427343
        %v800 = vsel %vm799, %v797, %v794
        %v801 = vadd.f32 %v765, 1.0
        %v802 = vlog2.pop %v801
        %v803 = vmul.f32 %v802, 0.6931472
        %v804 = vmul.f32 -0.5, %v765
        %v805 = vadd.f32 %v804, 1.0
        %v806 = vmul.f32 %v805, %v765
        %v807 = vand.u32 2147483647, %v765
        %vm808 = vcmp.lt.f32.partialorder %v807, 0.0004427343
        %v809 = vsel %vm808, %v806, %v803
        %v810 = vadd.f32 %v767, 1.0
        %v811 = vlog2.pop %v810
        %v812 = vmul.f32 %v811, 0.6931472
        %v813 = vmul.f32 -0.5, %v767
        %v814 = vadd.f32 %v813, 1.0
        %v815 = vmul.f32 %v814, %v767
        %v816 = vand.u32 2147483647, %v767
        %vm817 = vcmp.lt.f32.partialorder %v816, 0.0004427343
        %v818 = vsel %vm817, %v815, %v812
        %v819 = vadd.f32 %v769, 1.0
        %v820 = vlog2.pop %v819
        %v821 = vmul.f32 %v820, 0.6931472
        %v822 = vmul.f32 -0.5, %v769
        %v823 = vadd.f32 %v822, 1.0
        %v824 = vmul.f32 %v823, %v769
        %v825 = vand.u32 2147483647, %v769
        %vm826 = vcmp.lt.f32.partialorder %v825, 0.0004427343
        %v827 = vsel %vm826, %v824, %v821
        %v828 = vadd.f32 %v771, 1.0
        %v829 = vlog2.pop %v828
        %v830 = vmul.f32 %v829, 0.6931472
        %v831 = vmul.f32 -0.5, %v771
        %v832 = vadd.f32 %v831, 1.0
        %v833 = vmul.f32 %v832, %v771
        %v834 = vand.u32 2147483647, %v771
        %vm835 = vcmp.lt.f32.partialorder %v834, 0.0004427343
        %v836 = vsel %vm835, %v833, %v830
        %v837 = vadd.f32 %v773, 1.0
        %v838 = vlog2.pop %v837
        %v839 = vmul.f32 %v838, 0.6931472
        %v840 = vmul.f32 -0.5, %v773
        %v841 = vadd.f32 %v840, 1.0
        %v842 = vmul.f32 %v841, %v773
        %v843 = vand.u32 2147483647, %v773
        %vm844 = vcmp.lt.f32.partialorder %v843, 0.0004427343
        %v845 = vsel %vm844, %v842, %v839
        %v846 = vadd.f32 %v734, %v782
        %v847 = vadd.f32 %v735, %v791
        %v848 = vadd.f32 %v736, %v800
        %v849 = vadd.f32 %v737, %v809
        %v850 = vadd.f32 %v738, %v818
        %v851 = vadd.f32 %v739, %v827
        %v852 = vadd.f32 %v740, %v836
        %v853 = vadd.f32 %v741, %v845
        %v854 = vadd.f32 %v846, %v847
        %v855 = vadd.f32 %v854, %v848
        %v856 = vadd.f32 %v855, %v849
        %v857 = vadd.f32 %v856, %v850
        %v858 = vadd.f32 %v857, %v851
        %v859 = vadd.f32 %v858, %v852
        %v860 = vadd.f32 %v859, %v853
        %v861 = vadd.f32 %v716, %v860
        %s862 = scalar_lea.vmem %s117, 320 [#allocation2]
        %v863 = vld [vmem:[%s862] sm:$0xff]
        %v864 = vld [vmem:[%s862 + $0x8] sm:$0xff]
        %v865 = vld [vmem:[%s862 + $0x10] sm:$0xff]
        %v866 = vld [vmem:[%s862 + $0x18] sm:$0xff]
        %v867 = vld [vmem:[%s862 + $0x20] sm:$0xff]
        %v868 = vld [vmem:[%s862 + $0x28] sm:$0xff]
        %v869 = vld [vmem:[%s862 + $0x30] sm:$0xff]
        %v870 = vld [vmem:[%s862 + $0x38] sm:$0xff]
        %v871 = vmax.f32 %v863, 0.0
        %v872 = vmax.f32 %v864, 0.0
        %v873 = vmax.f32 %v865, 0.0
        %v874 = vmax.f32 %v866, 0.0
        %v875 = vmax.f32 %v867, 0.0
        %v876 = vmax.f32 %v868, 0.0
        %v877 = vmax.f32 %v869, 0.0
        %v878 = vmax.f32 %v870, 0.0
        %v879 = vsub.f32 %v871, %v863
        %v880 = vsub.f32 %v872, %v864
        %v881 = vsub.f32 %v873, %v865
        %v882 = vsub.f32 %v874, %v866
        %v883 = vsub.f32 %v875, %v867
        %v884 = vsub.f32 %v876, %v868
        %v885 = vsub.f32 %v877, %v869
        %v886 = vsub.f32 %v878, %v870
        %v887 = vand.u32 2147483647, %v863
        %v888 = vand.u32 2147483647, %v864
        %v889 = vand.u32 2147483647, %v865
        %v890 = vand.u32 2147483647, %v866
        %v891 = vand.u32 2147483647, %v867
        %v892 = vand.u32 2147483647, %v868
        %v893 = vand.u32 2147483647, %v869
        %v894 = vand.u32 2147483647, %v870
        %v895 = vsub.f32 0.0, %v887
        %v896 = vsub.f32 0.0, %v888
        %v897 = vsub.f32 0.0, %v889
        %v898 = vsub.f32 0.0, %v890
        %v899 = vsub.f32 0.0, %v891
        %v900 = vsub.f32 0.0, %v892
        %v901 = vsub.f32 0.0, %v893
        %v902 = vsub.f32 0.0, %v894
        %v903 = vmul.f32 %v895, 1.442695
        %v904 = vpow.pop %v903
        %v905 = vmul.f32 %v896, 1.442695
        %v906 = vpow.pop %v905
        %v907 = vmul.f32 %v897, 1.442695
        %v908 = vpow.pop %v907
        %v909 = vmul.f32 %v898, 1.442695
        %v910 = vpow.pop %v909
        %v911 = vmul.f32 %v899, 1.442695
        %v912 = vpow.pop %v911
        %v913 = vmul.f32 %v900, 1.442695
        %v914 = vpow.pop %v913
        %v915 = vmul.f32 %v901, 1.442695
        %v916 = vpow.pop %v915
        %v917 = vmul.f32 %v902, 1.442695
        %v918 = vpow.pop %v917
        %v919 = vadd.f32 %v904, 1.0
        %v920 = vlog2.pop %v919
        %v921 = vmul.f32 %v920, 0.6931472
        %v922 = vmul.f32 -0.5, %v904
        %v923 = vadd.f32 %v922, 1.0
        %v924 = vmul.f32 %v923, %v904
        %v925 = vand.u32 2147483647, %v904
        %vm926 = vcmp.lt.f32.partialorder %v925, 0.0004427343
        %v927 = vsel %vm926, %v924, %v921
        %v928 = vadd.f32 %v906, 1.0
        %v929 = vlog2.pop %v928
        %v930 = vmul.f32 %v929, 0.6931472
        %v931 = vmul.f32 -0.5, %v906
        %v932 = vadd.f32 %v931, 1.0
        %v933 = vmul.f32 %v932, %v906
        %v934 = vand.u32 2147483647, %v906
        %vm935 = vcmp.lt.f32.partialorder %v934, 0.0004427343
        %v936 = vsel %vm935, %v933, %v930
        %v937 = vadd.f32 %v908, 1.0
        %v938 = vlog2.pop %v937
        %v939 = vmul.f32 %v938, 0.6931472
        %v940 = vmul.f32 -0.5, %v908
        %v941 = vadd.f32 %v940, 1.0
        %v942 = vmul.f32 %v941, %v908
        %v943 = vand.u32 2147483647, %v908
        %vm944 = vcmp.lt.f32.partialorder %v943, 0.0004427343
        %v945 = vsel %vm944, %v942, %v939
        %v946 = vadd.f32 %v910, 1.0
        %v947 = vlog2.pop %v946
        %v948 = vmul.f32 %v947, 0.6931472
        %v949 = vmul.f32 -0.5, %v910
        %v950 = vadd.f32 %v949, 1.0
        %v951 = vmul.f32 %v950, %v910
        %v952 = vand.u32 2147483647, %v910
        %vm953 = vcmp.lt.f32.partialorder %v952, 0.0004427343
        %v954 = vsel %vm953, %v951, %v948
        %v955 = vadd.f32 %v912, 1.0
        %v956 = vlog2.pop %v955
        %v957 = vmul.f32 %v956, 0.6931472
        %v958 = vmul.f32 -0.5, %v912
        %v959 = vadd.f32 %v958, 1.0
        %v960 = vmul.f32 %v959, %v912
        %v961 = vand.u32 2147483647, %v912
        %vm962 = vcmp.lt.f32.partialorder %v961, 0.0004427343
        %v963 = vsel %vm962, %v960, %v957
        %v964 = vadd.f32 %v914, 1.0
        %v965 = vlog2.pop %v964
        %v966 = vmul.f32 %v965, 0.6931472
        %v967 = vmul.f32 -0.5, %v914
        %v968 = vadd.f32 %v967, 1.0
        %v969 = vmul.f32 %v968, %v914
        %v970 = vand.u32 2147483647, %v914
        %vm971 = vcmp.lt.f32.partialorder %v970, 0.0004427343
        %v972 = vsel %vm971, %v969, %v966
        %v973 = vadd.f32 %v916, 1.0
        %v974 = vlog2.pop %v973
        %v975 = vmul.f32 %v974, 0.6931472
        %v976 = vmul.f32 -0.5, %v916
        %v977 = vadd.f32 %v976, 1.0
        %v978 = vmul.f32 %v977, %v916
        %v979 = vand.u32 2147483647, %v916
        %vm980 = vcmp.lt.f32.partialorder %v979, 0.0004427343
        %v981 = vsel %vm980, %v978, %v975
        %v982 = vadd.f32 %v918, 1.0
        %v983 = vlog2.pop %v982
        %v984 = vmul.f32 %v983, 0.6931472
        %v985 = vmul.f32 -0.5, %v918
        %v986 = vadd.f32 %v985, 1.0
        %v987 = vmul.f32 %v986, %v918
        %v988 = vand.u32 2147483647, %v918
        %vm989 = vcmp.lt.f32.partialorder %v988, 0.0004427343
        %v990 = vsel %vm989, %v987, %v984
        %v991 = vadd.f32 %v879, %v927
        %v992 = vadd.f32 %v880, %v936
        %v993 = vadd.f32 %v881, %v945
        %v994 = vadd.f32 %v882, %v954
        %v995 = vadd.f32 %v883, %v963
        %v996 = vadd.f32 %v884, %v972
        %v997 = vadd.f32 %v885, %v981
        %v998 = vadd.f32 %v886, %v990
        %v999 = vadd.f32 %v991, %v992
        %v1000 = vadd.f32 %v999, %v993
        %v1001 = vadd.f32 %v1000, %v994
        %v1002 = vadd.f32 %v1001, %v995
        %v1003 = vadd.f32 %v1002, %v996
        %v1004 = vadd.f32 %v1003, %v997
        %v1005 = vadd.f32 %v1004, %v998
        %v1006 = vadd.f32 %v861, %v1005
        %s1007 = scalar_lea.vmem %s117, 384 [#allocation2]
        %v1008 = vld [vmem:[%s1007] sm:$0xff]
        %v1009 = vld [vmem:[%s1007 + $0x8] sm:$0xff]
        %v1010 = vld [vmem:[%s1007 + $0x10] sm:$0xff]
        %v1011 = vld [vmem:[%s1007 + $0x18] sm:$0xff]
        %v1012 = vld [vmem:[%s1007 + $0x20] sm:$0xff]
        %v1013 = vld [vmem:[%s1007 + $0x28] sm:$0xff]
        %v1014 = vld [vmem:[%s1007 + $0x30] sm:$0xff]
        %v1015 = vld [vmem:[%s1007 + $0x38] sm:$0xff]
        %v1016 = vmax.f32 %v1008, 0.0
        %v1017 = vmax.f32 %v1009, 0.0
        %v1018 = vmax.f32 %v1010, 0.0
        %v1019 = vmax.f32 %v1011, 0.0
        %v1020 = vmax.f32 %v1012, 0.0
        %v1021 = vmax.f32 %v1013, 0.0
        %v1022 = vmax.f32 %v1014, 0.0
        %v1023 = vmax.f32 %v1015, 0.0
        %v1024 = vsub.f32 %v1016, %v1008
        %v1025 = vsub.f32 %v1017, %v1009
        %v1026 = vsub.f32 %v1018, %v1010
        %v1027 = vsub.f32 %v1019, %v1011
        %v1028 = vsub.f32 %v1020, %v1012
        %v1029 = vsub.f32 %v1021, %v1013
        %v1030 = vsub.f32 %v1022, %v1014
        %v1031 = vsub.f32 %v1023, %v1015
        %v1032 = vand.u32 2147483647, %v1008
        %v1033 = vand.u32 2147483647, %v1009
        %v1034 = vand.u32 2147483647, %v1010
        %v1035 = vand.u32 2147483647, %v1011
        %v1036 = vand.u32 2147483647, %v1012
        %v1037 = vand.u32 2147483647, %v1013
        %v1038 = vand.u32 2147483647, %v1014
        %v1039 = vand.u32 2147483647, %v1015
        %v1040 = vsub.f32 0.0, %v1032
        %v1041 = vsub.f32 0.0, %v1033
        %v1042 = vsub.f32 0.0, %v1034
        %v1043 = vsub.f32 0.0, %v1035
        %v1044 = vsub.f32 0.0, %v1036
        %v1045 = vsub.f32 0.0, %v1037
        %v1046 = vsub.f32 0.0, %v1038
        %v1047 = vsub.f32 0.0, %v1039
        %v1048 = vmul.f32 %v1040, 1.442695
        %v1049 = vpow.pop %v1048
        %v1050 = vmul.f32 %v1041, 1.442695
        %v1051 = vpow.pop %v1050
        %v1052 = vmul.f32 %v1042, 1.442695
        %v1053 = vpow.pop %v1052
        %v1054 = vmul.f32 %v1043, 1.442695
        %v1055 = vpow.pop %v1054
        %v1056 = vmul.f32 %v1044, 1.442695
        %v1057 = vpow.pop %v1056
        %v1058 = vmul.f32 %v1045, 1.442695
        %v1059 = vpow.pop %v1058
        %v1060 = vmul.f32 %v1046, 1.442695
        %v1061 = vpow.pop %v1060
        %v1062 = vmul.f32 %v1047, 1.442695
        %v1063 = vpow.pop %v1062
        %v1064 = vadd.f32 %v1049, 1.0
        %v1065 = vlog2.pop %v1064
        %v1066 = vmul.f32 %v1065, 0.6931472
        %v1067 = vmul.f32 -0.5, %v1049
        %v1068 = vadd.f32 %v1067, 1.0
        %v1069 = vmul.f32 %v1068, %v1049
        %v1070 = vand.u32 2147483647, %v1049
        %vm1071 = vcmp.lt.f32.partialorder %v1070, 0.0004427343
        %v1072 = vsel %vm1071, %v1069, %v1066
        %v1073 = vadd.f32 %v1051, 1.0
        %v1074 = vlog2.pop %v1073
        %v1075 = vmul.f32 %v1074, 0.6931472
        %v1076 = vmul.f32 -0.5, %v1051
        %v1077 = vadd.f32 %v1076, 1.0
        %v1078 = vmul.f32 %v1077, %v1051
        %v1079 = vand.u32 2147483647, %v1051
        %vm1080 = vcmp.lt.f32.partialorder %v1079, 0.0004427343
        %v1081 = vsel %vm1080, %v1078, %v1075
        %v1082 = vadd.f32 %v1053, 1.0
        %v1083 = vlog2.pop %v1082
        %v1084 = vmul.f32 %v1083, 0.6931472
        %v1085 = vmul.f32 -0.5, %v1053
        %v1086 = vadd.f32 %v1085, 1.0
        %v1087 = vmul.f32 %v1086, %v1053
        %v1088 = vand.u32 2147483647, %v1053
        %vm1089 = vcmp.lt.f32.partialorder %v1088, 0.0004427343
        %v1090 = vsel %vm1089, %v1087, %v1084
        %v1091 = vadd.f32 %v1055, 1.0
        %v1092 = vlog2.pop %v1091
        %v1093 = vmul.f32 %v1092, 0.6931472
        %v1094 = vmul.f32 -0.5, %v1055
        %v1095 = vadd.f32 %v1094, 1.0
        %v1096 = vmul.f32 %v1095, %v1055
        %v1097 = vand.u32 2147483647, %v1055
        %vm1098 = vcmp.lt.f32.partialorder %v1097, 0.0004427343
        %v1099 = vsel %vm1098, %v1096, %v1093
        %v1100 = vadd.f32 %v1057, 1.0
        %v1101 = vlog2.pop %v1100
        %v1102 = vmul.f32 %v1101, 0.6931472
        %v1103 = vmul.f32 -0.5, %v1057
        %v1104 = vadd.f32 %v1103, 1.0
        %v1105 = vmul.f32 %v1104, %v1057
        %v1106 = vand.u32 2147483647, %v1057
        %vm1107 = vcmp.lt.f32.partialorder %v1106, 0.0004427343
        %v1108 = vsel %vm1107, %v1105, %v1102
        %v1109 = vadd.f32 %v1059, 1.0
        %v1110 = vlog2.pop %v1109
        %v1111 = vmul.f32 %v1110, 0.6931472
        %v1112 = vmul.f32 -0.5, %v1059
        %v1113 = vadd.f32 %v1112, 1.0
        %v1114 = vmul.f32 %v1113, %v1059
        %v1115 = vand.u32 2147483647, %v1059
        %vm1116 = vcmp.lt.f32.partialorder %v1115, 0.0004427343
        %v1117 = vsel %vm1116, %v1114, %v1111
        %v1118 = vadd.f32 %v1061, 1.0
        %v1119 = vlog2.pop %v1118
        %v1120 = vmul.f32 %v1119, 0.6931472
        %v1121 = vmul.f32 -0.5, %v1061
        %v1122 = vadd.f32 %v1121, 1.0
        %v1123 = vmul.f32 %v1122, %v1061
        %v1124 = vand.u32 2147483647, %v1061
        %vm1125 = vcmp.lt.f32.partialorder %v1124, 0.0004427343
        %v1126 = vsel %vm1125, %v1123, %v1120
        %v1127 = vadd.f32 %v1063, 1.0
        %v1128 = vlog2.pop %v1127
        %v1129 = vmul.f32 %v1128, 0.6931472
        %v1130 = vmul.f32 -0.5, %v1063
        %v1131 = vadd.f32 %v1130, 1.0
        %v1132 = vmul.f32 %v1131, %v1063
        %v1133 = vand.u32 2147483647, %v1063
        %vm1134 = vcmp.lt.f32.partialorder %v1133, 0.0004427343
        %v1135 = vsel %vm1134, %v1132, %v1129
        %v1136 = vadd.f32 %v1024, %v1072
        %v1137 = vadd.f32 %v1025, %v1081
        %v1138 = vadd.f32 %v1026, %v1090
        %v1139 = vadd.f32 %v1027, %v1099
        %v1140 = vadd.f32 %v1028, %v1108
        %v1141 = vadd.f32 %v1029, %v1117
        %v1142 = vadd.f32 %v1030, %v1126
        %v1143 = vadd.f32 %v1031, %v1135
        %v1144 = vadd.f32 %v1136, %v1137
        %v1145 = vadd.f32 %v1144, %v1138
        %v1146 = vadd.f32 %v1145, %v1139
        %v1147 = vadd.f32 %v1146, %v1140
        %v1148 = vadd.f32 %v1147, %v1141
        %v1149 = vadd.f32 %v1148, %v1142
        %v1150 = vadd.f32 %v1149, %v1143
        %v1151 = vadd.f32 %v1006, %v1150
        %s1152 = scalar_lea.vmem %s117, 448 [#allocation2]
        %v1153 = vld [vmem:[%s1152] sm:$0xff]
        %v1154 = vld [vmem:[%s1152 + $0x8] sm:$0xff]
        %v1155 = vld [vmem:[%s1152 + $0x10] sm:$0xff]
        %v1156 = vld [vmem:[%s1152 + $0x18] sm:$0xff]
        %v1157 = vld [vmem:[%s1152 + $0x20] sm:$0xff]
        %v1158 = vld [vmem:[%s1152 + $0x28] sm:$0xff]
        %v1159 = vld [vmem:[%s1152 + $0x30] sm:$0xff]
        %v1160 = vld [vmem:[%s1152 + $0x38] sm:$0xff]
        %v1161 = vmax.f32 %v1153, 0.0
        %v1162 = vmax.f32 %v1154, 0.0
        %v1163 = vmax.f32 %v1155, 0.0
        %v1164 = vmax.f32 %v1156, 0.0
        %v1165 = vmax.f32 %v1157, 0.0
        %v1166 = vmax.f32 %v1158, 0.0
        %v1167 = vmax.f32 %v1159, 0.0
        %v1168 = vmax.f32 %v1160, 0.0
        %v1169 = vsub.f32 %v1161, %v1153
        %v1170 = vsub.f32 %v1162, %v1154
        %v1171 = vsub.f32 %v1163, %v1155
        %v1172 = vsub.f32 %v1164, %v1156
        %v1173 = vsub.f32 %v1165, %v1157
        %v1174 = vsub.f32 %v1166, %v1158
        %v1175 = vsub.f32 %v1167, %v1159
        %v1176 = vsub.f32 %v1168, %v1160
        %v1177 = vand.u32 2147483647, %v1153
        %v1178 = vand.u32 2147483647, %v1154
        %v1179 = vand.u32 2147483647, %v1155
        %v1180 = vand.u32 2147483647, %v1156
        %v1181 = vand.u32 2147483647, %v1157
        %v1182 = vand.u32 2147483647, %v1158
        %v1183 = vand.u32 2147483647, %v1159
        %v1184 = vand.u32 2147483647, %v1160
        %v1185 = vsub.f32 0.0, %v1177
        %v1186 = vsub.f32 0.0, %v1178
        %v1187 = vsub.f32 0.0, %v1179
        %v1188 = vsub.f32 0.0, %v1180
        %v1189 = vsub.f32 0.0, %v1181
        %v1190 = vsub.f32 0.0, %v1182
        %v1191 = vsub.f32 0.0, %v1183
        %v1192 = vsub.f32 0.0, %v1184
        %v1193 = vmul.f32 %v1185, 1.442695
        %v1194 = vpow.pop %v1193
        %v1195 = vmul.f32 %v1186, 1.442695
        %v1196 = vpow.pop %v1195
        %v1197 = vmul.f32 %v1187, 1.442695
        %v1198 = vpow.pop %v1197
        %v1199 = vmul.f32 %v1188, 1.442695
        %v1200 = vpow.pop %v1199
        %v1201 = vmul.f32 %v1189, 1.442695
        %v1202 = vpow.pop %v1201
        %v1203 = vmul.f32 %v1190, 1.442695
        %v1204 = vpow.pop %v1203
        %v1205 = vmul.f32 %v1191, 1.442695
        %v1206 = vpow.pop %v1205
        %v1207 = vmul.f32 %v1192, 1.442695
        %v1208 = vpow.pop %v1207
        %v1209 = vadd.f32 %v1194, 1.0
        %v1210 = vlog2.pop %v1209
        %v1211 = vmul.f32 %v1210, 0.6931472
        %v1212 = vmul.f32 -0.5, %v1194
        %v1213 = vadd.f32 %v1212, 1.0
        %v1214 = vmul.f32 %v1213, %v1194
        %v1215 = vand.u32 2147483647, %v1194
        %vm1216 = vcmp.lt.f32.partialorder %v1215, 0.0004427343
        %v1217 = vsel %vm1216, %v1214, %v1211
        %v1218 = vadd.f32 %v1196, 1.0
        %v1219 = vlog2.pop %v1218
        %v1220 = vmul.f32 %v1219, 0.6931472
        %v1221 = vmul.f32 -0.5, %v1196
        %v1222 = vadd.f32 %v1221, 1.0
        %v1223 = vmul.f32 %v1222, %v1196
        %v1224 = vand.u32 2147483647, %v1196
        %vm1225 = vcmp.lt.f32.partialorder %v1224, 0.0004427343
        %v1226 = vsel %vm1225, %v1223, %v1220
        %v1227 = vadd.f32 %v1198, 1.0
        %v1228 = vlog2.pop %v1227
        %v1229 = vmul.f32 %v1228, 0.6931472
        %v1230 = vmul.f32 -0.5, %v1198
        %v1231 = vadd.f32 %v1230, 1.0
        %v1232 = vmul.f32 %v1231, %v1198
        %v1233 = vand.u32 2147483647, %v1198
        %vm1234 = vcmp.lt.f32.partialorder %v1233, 0.0004427343
        %v1235 = vsel %vm1234, %v1232, %v1229
        %v1236 = vadd.f32 %v1200, 1.0
        %v1237 = vlog2.pop %v1236
        %v1238 = vmul.f32 %v1237, 0.6931472
        %v1239 = vmul.f32 -0.5, %v1200
        %v1240 = vadd.f32 %v1239, 1.0
        %v1241 = vmul.f32 %v1240, %v1200
        %v1242 = vand.u32 2147483647, %v1200
        %vm1243 = vcmp.lt.f32.partialorder %v1242, 0.0004427343
        %v1244 = vsel %vm1243, %v1241, %v1238
        %v1245 = vadd.f32 %v1202, 1.0
        %v1246 = vlog2.pop %v1245
        %v1247 = vmul.f32 %v1246, 0.6931472
        %v1248 = vmul.f32 -0.5, %v1202
        %v1249 = vadd.f32 %v1248, 1.0
        %v1250 = vmul.f32 %v1249, %v1202
        %v1251 = vand.u32 2147483647, %v1202
        %vm1252 = vcmp.lt.f32.partialorder %v1251, 0.0004427343
        %v1253 = vsel %vm1252, %v1250, %v1247
        %v1254 = vadd.f32 %v1204, 1.0
        %v1255 = vlog2.pop %v1254
        %v1256 = vmul.f32 %v1255, 0.6931472
        %v1257 = vmul.f32 -0.5, %v1204
        %v1258 = vadd.f32 %v1257, 1.0
        %v1259 = vmul.f32 %v1258, %v1204
        %v1260 = vand.u32 2147483647, %v1204
        %vm1261 = vcmp.lt.f32.partialorder %v1260, 0.0004427343
        %v1262 = vsel %vm1261, %v1259, %v1256
        %v1263 = vadd.f32 %v1206, 1.0
        %v1264 = vlog2.pop %v1263
        %v1265 = vmul.f32 %v1264, 0.6931472
        %v1266 = vmul.f32 -0.5, %v1206
        %v1267 = vadd.f32 %v1266, 1.0
        %v1268 = vmul.f32 %v1267, %v1206
        %v1269 = vand.u32 2147483647, %v1206
        %vm1270 = vcmp.lt.f32.partialorder %v1269, 0.0004427343
        %v1271 = vsel %vm1270, %v1268, %v1265
        %v1272 = vadd.f32 %v1208, 1.0
        %v1273 = vlog2.pop %v1272
        %v1274 = vmul.f32 %v1273, 0.6931472
        %v1275 = vmul.f32 -0.5, %v1208
        %v1276 = vadd.f32 %v1275, 1.0
        %v1277 = vmul.f32 %v1276, %v1208
        %v1278 = vand.u32 2147483647, %v1208
        %vm1279 = vcmp.lt.f32.partialorder %v1278, 0.0004427343
        %v1280 = vsel %vm1279, %v1277, %v1274
        %v1281 = vadd.f32 %v1169, %v1217
        %v1282 = vadd.f32 %v1170, %v1226
        %v1283 = vadd.f32 %v1171, %v1235
        %v1284 = vadd.f32 %v1172, %v1244
        %v1285 = vadd.f32 %v1173, %v1253
        %v1286 = vadd.f32 %v1174, %v1262
        %v1287 = vadd.f32 %v1175, %v1271
        %v1288 = vadd.f32 %v1176, %v1280
        %v1289 = vadd.f32 %v1281, %v1282
        %v1290 = vadd.f32 %v1289, %v1283
        %v1291 = vadd.f32 %v1290, %v1284
        %v1292 = vadd.f32 %v1291, %v1285
        %v1293 = vadd.f32 %v1292, %v1286
        %v1294 = vadd.f32 %v1293, %v1287
        %v1295 = vadd.f32 %v1294, %v1288
        %v1296 = vadd.f32 %v1151, %v1295
        %1297 = vst [vmem:[%s136] sm:$0xff] %v1296
        %s1298 = sand.u32 %s52, 1
        %s1299 = scalar_lea.sflag [#allocation4], %s1298
        %s1300 = sand.u32 %s52, 1
        %s1301 = smul.addr %s1300, 8
        %s1302 = scalar_lea.vmem [#allocation5], %s1301
        // Predicated region
        $region29: #{tpu_custom_call.1} parent=23 // pred_check
          %p1303 = pneg %p62
        $region30: #{tpu_custom_call.1} parent=23 // pred_check_branch
          %1305 = sbr.rel (%p1303) target = $region32
        $region31: #{tpu_custom_call.1} parent=23 // pred_region
          %1307 = vsyncadd %s1299, 0
          %s1308 = smul.addr %s18, 8
          %s1309 = scalar_lea.hbm %s1, %s1308
          %s1311 = sshll.u32 %s1302, 4
          %s1312 = int_to_ptr.vmem [resolvable:$true] %s1311
          %s1313 = sshll.u32 %s1309, 4
          %s1314 = int_to_ptr.hbm [resolvable:$true] %s1313
          %1316 = dma.vmem_to_hbm [thread:$0]  %s1312, 128, %s1314, %s1299
        $region32: #{tpu_custom_call.1} parent=23 // pred_fallthru
          _
      $region24: #{tpu_custom_call.1} parent=5 // pred_fallthru
        _
      %p1317 = scmp.le.s32.totalorder 2, %s13
      // Predicated region
      $region33: #{tpu_custom_call.1} parent=5 // pred_check
        %p1318 = pneg %p1317
      $region34: #{tpu_custom_call.1} parent=5 // pred_check_branch
        %1320 = sbr.rel (%p1318) target = $region36
      $region35: #{tpu_custom_call.1} parent=5 // pred_region
        %s1321 = ssub.s32 %s13, 2
        // Predicated region
        $region37: #{tpu_custom_call.1} parent=35 // pred_check
          %p1322 = pneg %p68
        $region38: #{tpu_custom_call.1} parent=35 // pred_check_branch
          %1324 = sbr.rel (%p1322) target = $region40
        $region39: #{tpu_custom_call.1} parent=35 // pred_region
          %s1325 = sand.u32 %s53, 1
          %s1326 = scalar_lea.sflag [#allocation4], %s1325
          %s1327 = sand.u32 %s53, 1
          %s1328 = smul.addr %s1327, 8
          %s1329 = scalar_lea.vmem [#allocation5], %s1328
          %1331 = dma.done %s1326, 128
        $region40: #{tpu_custom_call.1} parent=35 // pred_fallthru
          _
      $region36: #{tpu_custom_call.1} parent=5 // pred_fallthru
        _
    $region6: #{tpu_custom_call.1} parent=1 // loop_footer
      %s17 = sadd.s32 1, %s13
    $region7: #{tpu_custom_call.1} parent=1 // loop_footer_branch
      %12 = sbr.rel target = $region3
    $region8: #{tpu_custom_call.1} parent=1 // loop_exit
      _
    %1332 = vsyncpa [#allocation3], 1
    %s1333 = scalar_lea.sflag [#allocation3], 1
    %1334 = vsyncpa %s1333, 1
    %1335 = vsyncpa [#allocation4], 1
    %s1336 = scalar_lea.sflag [#allocation4], 1
    %1337 = vsyncpa %s1336, 1

</llo_original>
